<compile_context>
chip_gen: v7x
topology: tpu7x:2x2x1
jax: 0.10.0
libtpu: 0.0.40
codegen_flags: <defaults>
</compile_context>

<pallas_src>
import functools

import jax
import jax.numpy as jnp
import numpy as np
from jax.experimental import pallas as pl
from jax.experimental.pallas import tpu as pltpu


def _round_up(v, m):
    return ((v + m - 1) // m) * m


def _layernorm(h, gamma, beta, eps=1e-5):
    mean = jnp.mean(h, axis=-1, keepdims=True)
    var = jnp.mean((h - mean) ** 2, axis=-1, keepdims=True)
    return (h - mean) * jax.lax.rsqrt(var + eps) * gamma + beta


def _vmem_budget_bytes():
    """Physical-VMEM-aware budget (v5e/v6e: 128 MiB, v7x: 64 MiB per core)."""
    try:
        cap = int(pltpu.get_tpu_info().vmem_capacity_bytes)
    except Exception:
        cap = 64 * 1024 * 1024           # conservative fallback (v7x per-TC)
    return max(cap - 8 * 1024 * 1024, 16 * 1024 * 1024)


# --------------------------------------------------------------------------
# Phase 1: edge MLP + scatter-add  (grid = (cores, edge_tiles))
# --------------------------------------------------------------------------
def gin_edge_kernel(
    # inputs
    x_ref, row_ref, col_ref, ea_ref,
    w_en_a_ref, w_en_b_ref, b_en_ref, g1_ref, be1_ref,
    # output (per-core partial aggregate, resident across the edge-tile axis)
    agg_ref,
    # scratch
    xw_scr, iota_g_scr, iota_s_scr,
):
    mdt = xw_scr.dtype                       # MXU operand dtype (f32 or bf16)
    t = pl.program_id(1)

    # ---- first edge tile of this core: init accumulator + constants --------
    @pl.when(t == 0)
    def _init():
        xw_scr[...] = jnp.dot(
            x_ref[...].astype(mdt), w_en_a_ref[...],
            preferred_element_type=jnp.float32).astype(mdt)
        # node-index iotas (constant across tiles) in both MXU orientations
        iota_g_scr[...] = jax.lax.broadcasted_iota(jnp.int32, iota_g_scr.shape, 1)
        iota_s_scr[...] = jax.lax.broadcasted_iota(jnp.int32, iota_s_scr.shape, 0)
        agg_ref[...] = jnp.zeros_like(agg_ref)

    # ---- gather (reassociated):  onehot[tE,Npad] @ (x @ w_en_a)[Npad,Din] ---
    # Padded edges carry row == 0; their (finite) garbage h row is zeroed by
    # the scatter mask below (padded col == N_pad matches no node).
    mask_g = (iota_g_scr[...] == row_ref[...]).astype(mdt)          # [tE, Npad]
    h = (jnp.dot(mask_g, xw_scr[...], preferred_element_type=jnp.float32)
         + jnp.dot(ea_ref[...], w_en_b_ref[...],
                   preferred_element_type=jnp.float32)
         + b_en_ref[...])
    h = _layernorm(h, g1_ref[...], be1_ref[...])
    h = jnp.maximum(h, 0.0)                                         # [tE, Din]

    # ---- scatter-add over col: [Npad,tE] mask, plain jnp.dot ----------------
    mask_s = (iota_s_scr[...] == col_ref[...]).astype(mdt)          # [Npad, tE]
    agg_ref[...] += jnp.dot(mask_s, h.astype(mdt),
                            preferred_element_type=jnp.float32)     # [Npad, Din]


# --------------------------------------------------------------------------
# Phase 2: node MLP + tail matmuls + residual  (grid = (node_tiles,), parallel)
# --------------------------------------------------------------------------
def gin_node_kernel(
    x_ref, agg_ref, eps_ref,
    w_m1_ref, b_m1_ref, g2_ref, be2_ref,
    w_m2_ref, w_pr_ref, b_tail_ref,
    out_ref, *, mxu_dtype,
):
    def mx(v):
        return v.astype(mxu_dtype)

    x = x_ref[...]                                   # [tN, Din] f32
    agg = jnp.sum(agg_ref[...], axis=0)              # sum per-core partials
    node = (1.0 + eps_ref[0]) * x + agg
    h2 = jnp.dot(mx(node), w_m1_ref[...],
                 preferred_element_type=jnp.float32) + b_m1_ref[...]
    h2 = _layernorm(h2, g2_ref[...], be2_ref[...])
    h2 = jnp.maximum(h2, 0.0)
    # tail: h2 @ w_m2 + x @ w_pr, biases folded into b_tail (lane-padded)
    out = (jnp.dot(mx(h2), w_m2_ref[...], preferred_element_type=jnp.float32)
           + jnp.dot(mx(x), w_pr_ref[...], preferred_element_type=jnp.float32)
           + b_tail_ref[...])
    out_ref[...] = out.astype(out_ref.dtype)


@functools.partial(jax.jit, static_argnames=("tile_e", "node_tile",
                                              "num_edge_cores",
                                              "use_bf16_matmul"))
def gin_forward(x, edge_index, edge_attr, params, *, tile_e=1024, node_tile=256,
                num_edge_cores=2, use_bf16_matmul=False):
    N, Din = x.shape
    E = edge_attr.shape[0]
    Dout = params["w_m2"].shape[1]
    dout_pad = _round_up(Dout, 128)          # lane-dense output -> unmasked vst
    mdt = jnp.bfloat16 if use_bf16_matmul else jnp.float32
    mb = 2 if use_bf16_matmul else 4
    C = num_edge_cores

    budget = _vmem_budget_bytes()

    # ---- node tiling (also defines the padded node count used in phase 1) --
    t_n = _round_up(min(node_tile, max(N, 1)), 8)
    n_pad = _round_up(N, t_n)

    # ---- edge tile: bf16 sublane / MXU alignment, sized to the VMEM budget --
    align = 256 if tile_e >= 256 else (16 if use_bf16_matmul else 8)
    e_half = -(-E // C)
    t_e = min(_round_up(tile_e, align), _round_up(max(e_half, 1), align))

    def phase1_bytes(te):
        resident = (8 + mb) * n_pad * Din            # x + agg block + xw cache
        resident += 2 * mb * Din * Din + 32 * Din    # weights + vectors
        iotas = 8 * te * n_pad                       # two i32 iota scratches
        tiles = 2 * (mb * te * Din + 4 * te * 128 + 32 * te)   # dbl-buffered
        temps = 3 * mb * te * n_pad + 16 * te * Din  # masks + h + slack
        return resident + iotas + tiles + temps

    while t_e > align and phase1_bytes(t_e) > 0.7 * budget:
        t_e = max(align, _round_up(t_e // 2, align))

    e_per_core = _round_up(max(e_half, 1), t_e)
    n_per_core = e_per_core // t_e
    e_tot = C * e_per_core
    n_tiles_tot = C * n_per_core
    pad_e = e_tot - E

    # ---- pack / precast inputs ----------------------------------------------
    row = edge_index[0].astype(jnp.int32)
    col = edge_index[1].astype(jnp.int32)
    row_p = jnp.pad(row, (0, pad_e)).reshape(e_tot, 1)
    # padded col == n_pad matches no node -> padded edges contribute nothing
    col_p = jnp.pad(col, (0, pad_e),
                    constant_values=n_pad).reshape(n_tiles_tot, 1, t_e)
    ea_p = jnp.pad(edge_attr.astype(jnp.float32),
                   ((0, pad_e), (0, 0))).astype(mdt)

    x_f32 = x.astype(jnp.float32)
    x_p = jnp.pad(x_f32, ((0, n_pad - N), (0, 0)))

    w_en = params["w_en"]
    w_en_a = w_en[:Din].astype(mdt)
    w_en_b = w_en[Din:].astype(mdt)
    b_en = params["b_en"].astype(jnp.float32)
    g1 = params["g1"].astype(jnp.float32)
    be1 = params["be1"].astype(jnp.float32)

    # ---- phase 1 -------------------------------------------------------------
    def tile_idx(c, t):
        return c * n_per_core + t

    const2 = lambda shape: pl.BlockSpec(shape, lambda c, t: (0, 0))
    p1_in_specs = [
        const2((n_pad, Din)),                                             # x
        pl.BlockSpec((t_e, 1), lambda c, t: (tile_idx(c, t), 0)),         # row
        pl.BlockSpec((None, 1, t_e), lambda c, t: (tile_idx(c, t), 0, 0)),  # col
        pl.BlockSpec((t_e, Din), lambda c, t: (tile_idx(c, t), 0)),       # edge_attr
        const2((Din, Din)), const2((Din, Din)), const2((1, Din)),
        const2((1, Din)), const2((1, Din)),
    ]
    p1_out_specs = pl.BlockSpec((None, n_pad, Din), lambda c, t: (c, 0, 0))
    p1_scratch = [pltpu.VMEM((n_pad, Din), mdt),          # x @ w_en_a cache
                  pltpu.VMEM((t_e, n_pad), jnp.int32),     # iota (gather orient.)
                  pltpu.VMEM((n_pad, t_e), jnp.int32)]     # iota (scatter orient.)

    p1_flops = (4 * e_tot * n_pad * Din + 2 * e_tot * Din * Din
                + C * 2 * n_pad * Din * Din)
    p1_cost = pl.CostEstimate(
        flops=int(p1_flops), transcendentals=int(e_tot),
        bytes_accessed=int(4 * (n_pad * Din * (1 + C) + 2 * Din * Din)
                           + mb * e_tot * Din + 8 * e_tot))

    agg = pl.pallas_call(
        gin_edge_kernel,
        out_shape=jax.ShapeDtypeStruct((C, n_pad, Din), jnp.float32),
        grid=(C, n_per_core),
        in_specs=p1_in_specs,
        out_specs=p1_out_specs,
        scratch_shapes=p1_scratch,
        compiler_params=pltpu.CompilerParams(
            dimension_semantics=("parallel", "arbitrary"),
            vmem_limit_bytes=int(budget)),
        cost_estimate=p1_cost,
    )(x_p, row_p, col_p, ea_p, w_en_a, w_en_b, b_en, g1, be1)

    # ---- phase 2 -------------------------------------------------------------
    pad_o = dout_pad - Dout
    w_m1 = params["w_m1"].astype(mdt)
    b_m1 = params["b_m1"].astype(jnp.float32)
    g2 = params["g2"].astype(jnp.float32)
    be2 = params["be2"].astype(jnp.float32)
    w_m2p = jnp.pad(params["w_m2"], ((0, 0), (0, pad_o))).astype(mdt)
    w_prp = jnp.pad(params["w_pr"], ((0, 0), (0, pad_o))).astype(mdt)
    b_tail = jnp.pad(params["b_m2"] + params["b_pr"],
                     ((0, 0), (0, pad_o))).astype(jnp.float32)
    eps = params["eps"].reshape(1).astype(jnp.float32)

    n_node_tiles = n_pad // t_n
    const1 = lambda shape: pl.BlockSpec(shape, lambda i: (0, 0))
    p2_in_specs = [
        pl.BlockSpec((t_n, Din), lambda i: (i, 0)),              # x
        pl.BlockSpec((C, t_n, Din), lambda i: (0, i, 0)),        # agg partials
        pl.BlockSpec(memory_space=pltpu.MemorySpace.SMEM),       # eps scalar
        const1((Din, Din)), const1((1, Din)), const1((1, Din)), const1((1, Din)),
        const1((Din, dout_pad)), const1((Din, dout_pad)), const1((1, dout_pad)),
    ]
    p2_out_specs = pl.BlockSpec((t_n, dout_pad), lambda i: (i, 0))

    p2_flops = 2 * n_pad * Din * Din + 4 * n_pad * Din * dout_pad
    p2_cost = pl.CostEstimate(
        flops=int(p2_flops), transcendentals=int(n_pad),
        bytes_accessed=int(4 * n_pad * (Din * (1 + C) + dout_pad)
                           + mb * Din * (Din + 2 * dout_pad)))

    out = pl.pallas_call(
        functools.partial(gin_node_kernel, mxu_dtype=mdt),
        out_shape=jax.ShapeDtypeStruct((n_pad, dout_pad), jnp.float32),
        grid=(n_node_tiles,),
        in_specs=p2_in_specs,
        out_specs=p2_out_specs,
        compiler_params=pltpu.CompilerParams(
            dimension_semantics=("parallel",),
            vmem_limit_bytes=int(budget)),
        cost_estimate=p2_cost,
    )(x_p, agg, eps, w_m1, b_m1, g2, be2, w_m2p, w_prp, b_tail)

    return out[:N, :Dout]


def gin_reference(x, edge_index, edge_attr, params):
    """Pure-JAX reference replicating the PyTorch forward."""
    N, Din = x.shape
    row, col = edge_index[0], edge_index[1]
    x_j = x[row]
    x_comb = jnp.concatenate([x_j, edge_attr], axis=1)
    h = x_comb @ params["w_en"] + params["b_en"]
    h = _layernorm(h, params["g1"], params["be1"])
    h = jnp.maximum(h, 0.0)
    agg = jnp.zeros((N, Din), jnp.float32).at[col].add(h)
    out = (1.0 + params["eps"][0]) * x + agg
    h2 = out @ params["w_m1"] + params["b_m1"]
    h2 = _layernorm(h2, params["g2"], params["be2"])
    h2 = jnp.maximum(h2, 0.0)
    h3 = h2 @ params["w_m2"] + params["b_m2"]
    identity = x @ params["w_pr"] + params["b_pr"]
    return h3 + identity


if __name__ == "__main__":
    key = jax.random.PRNGKey(0)
    N, E, Din, Dout = 16, 48, 32, 64

    ks = jax.random.split(key, 16)
    x = jax.random.normal(ks[0], (N, Din), jnp.float32)
    edge_attr = jax.random.normal(ks[1], (E, Din), jnp.float32)
    row = jax.random.randint(ks[2], (E,), 0, N, jnp.int32)
    col = jax.random.randint(ks[3], (E,), 0, N, jnp.int32)
    edge_index = jnp.stack([row, col], axis=0)            # [2, E]

    s = 0.1
    params = {
        "w_en": s * jax.random.normal(ks[4], (2 * Din, Din), jnp.float32),
        "b_en": s * jax.random.normal(ks[5], (1, Din), jnp.float32),
        "g1": jnp.ones((1, Din), jnp.float32),
        "be1": jnp.zeros((1, Din), jnp.float32),
        "w_m1": s * jax.random.normal(ks[6], (Din, Din), jnp.float32),
        "b_m1": s * jax.random.normal(ks[7], (1, Din), jnp.float32),
        "g2": jnp.ones((1, Din), jnp.float32),
        "be2": jnp.zeros((1, Din), jnp.float32),
        "w_m2": s * jax.random.normal(ks[8], (Din, Dout), jnp.float32),
        "b_m2": s * jax.random.normal(ks[9], (1, Dout), jnp.float32),
        "w_pr": s * jax.random.normal(ks[10], (Din, Dout), jnp.float32),
        "b_pr": s * jax.random.normal(ks[11], (1, Dout), jnp.float32),
        "eps": jnp.zeros((1,), jnp.float32),               # nn.Parameter([0])
    }

    ref = gin_reference(x, edge_index, edge_attr, params)

    # f32 MXU path; tile_e=16 / node_tile=8 / 2 edge "cores" exercise the
    # init / accumulate / per-core-partial / node-tile paths on any chip.
    out = gin_forward(x, edge_index, edge_attr, params,
                      tile_e=16, node_tile=8, num_edge_cores=2,
                      use_bf16_matmul=False)
    out = jax.block_until_ready(out)
    np.testing.assert_allclose(np.asarray(out), np.asarray(ref),
                               rtol=1e-4, atol=1e-4)

    # bf16 MXU-operand path (v5e/v6e/v7x fast path) -- loose tolerance by design.
    out_bf16 = gin_forward(x, edge_index, edge_attr, params,
                           tile_e=16, node_tile=8, num_edge_cores=2,
                           use_bf16_matmul=True)
    out_bf16 = jax.block_until_ready(out_bf16)
    np.testing.assert_allclose(np.asarray(out_bf16), np.asarray(ref),
                               rtol=1e-1, atol=1e-1)

    print("KERNEL_OK")
</pallas_src>

<mosaic_0001>
module attributes {stable_mosaic.version = 11 : i64} {
  func.func @gin_edge_kernel(%arg0: i32, %arg1: i32, %arg2: memref<16x32xf32, #tpu.memory_space<vmem>>, %arg3: memref<16x1xi32, #tpu.memory_space<vmem>>, %arg4: memref<1x1x16xi32, #tpu.memory_space<vmem>>, %arg5: memref<16x32xf32, #tpu.memory_space<vmem>>, %arg6: memref<32x32xf32, #tpu.memory_space<vmem>>, %arg7: memref<32x32xf32, #tpu.memory_space<vmem>>, %arg8: memref<1x32xf32, #tpu.memory_space<vmem>>, %arg9: memref<1x32xf32, #tpu.memory_space<vmem>>, %arg10: memref<1x32xf32, #tpu.memory_space<vmem>>, %arg11: memref<1x16x32xf32, #tpu.memory_space<vmem>>, %arg12: memref<16x32xf32, #tpu.memory_space<vmem>>, %arg13: memref<16x16xi32, #tpu.memory_space<vmem>>, %arg14: memref<16x16xi32, #tpu.memory_space<vmem>>) attributes {dimension_semantics = [#tpu.dimension_semantics<parallel>, #tpu.dimension_semantics<arbitrary>], iteration_bounds = array<i64: 2, 2>, scalar_prefetch = 0 : i64, scratch_operands = 3 : i64, tpu.core_type = #tpu.core_type<tc>, window_params = [{pipeline_mode = #tpu.pipeline_mode<synchronous>, transform_indices = @transform_0, window_bounds = array<i64: 16, 32>}, {transform_indices = @transform_1, window_bounds = array<i64: 16, 1>}, {transform_indices = @transform_2, window_bounds = array<i64: 1, 1, 16>}, {transform_indices = @transform_3, window_bounds = array<i64: 16, 32>}, {pipeline_mode = #tpu.pipeline_mode<synchronous>, transform_indices = @transform_4, window_bounds = array<i64: 32, 32>}, {pipeline_mode = #tpu.pipeline_mode<synchronous>, transform_indices = @transform_5, window_bounds = array<i64: 32, 32>}, {pipeline_mode = #tpu.pipeline_mode<synchronous>, transform_indices = @transform_6, window_bounds = array<i64: 1, 32>}, {pipeline_mode = #tpu.pipeline_mode<synchronous>, transform_indices = @transform_7, window_bounds = array<i64: 1, 32>}, {pipeline_mode = #tpu.pipeline_mode<synchronous>, transform_indices = @transform_8, window_bounds = array<i64: 1, 32>}, {transform_indices = @transform_9, window_bounds = array<i64: 1, 16, 32>}]} {
    %c0_i32 = arith.constant 0 : i32
    %0 = arith.cmpi eq, %arg1, %c0_i32 : i32
    %1 = arith.extui %0 : i1 to i32
    %c0_i32_0 = arith.constant 0 : i32
    %2 = arith.cmpi ne, %1, %c0_i32_0 : i32
    scf.if %2 {
      %c0_35 = arith.constant 0 : index
      %c0_36 = arith.constant 0 : index
      %58 = vector.load %arg2[%c0_35, %c0_36] : memref<16x32xf32, #tpu.memory_space<vmem>>, vector<16x32xf32>
      %c0_37 = arith.constant 0 : index
      %c0_38 = arith.constant 0 : index
      %59 = vector.load %arg6[%c0_37, %c0_38] : memref<32x32xf32, #tpu.memory_space<vmem>>, vector<32x32xf32>
      %cst_39 = arith.constant dense<0.000000e+00> : vector<16x32xf32>
      %60 = tpu.matmul %58, %59, %cst_39 {dimension_numbers = #tpu.dot_dimension_numbers<[1], [0], [0], [1], [0, 0, 1, 1], [], []>} : vector<16x32xf32>, vector<32x32xf32>, vector<16x32xf32> -> vector<16x32xf32>
      %c0_40 = arith.constant 0 : index
      %c0_41 = arith.constant 0 : index
      %61 = vector.load %arg12[%c0_40, %c0_41] : memref<16x32xf32, #tpu.memory_space<vmem>>, vector<16x32xf32>
      tpu.vector_store %arg12[%c0_40, %c0_41], %60 {strides = array<i32>} : memref<16x32xf32, #tpu.memory_space<vmem>>, vector<16x32xf32>,
      %62 = tpu.iota {dimensions = array<i32: 1>} : vector<16x16xi32>
      %c0_42 = arith.constant 0 : index
      %c0_43 = arith.constant 0 : index
      %63 = vector.load %arg13[%c0_42, %c0_43] : memref<16x16xi32, #tpu.memory_space<vmem>>, vector<16x16xi32>
      tpu.vector_store %arg13[%c0_42, %c0_43], %62 {strides = array<i32>} : memref<16x16xi32, #tpu.memory_space<vmem>>, vector<16x16xi32>,
      %64 = tpu.iota {dimensions = array<i32: 0>} : vector<16x16xi32>
      %c0_44 = arith.constant 0 : index
      %c0_45 = arith.constant 0 : index
      %65 = vector.load %arg14[%c0_44, %c0_45] : memref<16x16xi32, #tpu.memory_space<vmem>>, vector<16x16xi32>
      tpu.vector_store %arg14[%c0_44, %c0_45], %64 {strides = array<i32>} : memref<16x16xi32, #tpu.memory_space<vmem>>, vector<16x16xi32>,
      %cst_46 = arith.constant 0.000000e+00 : f32
      %66 = vector.broadcast %cst_46 : f32 to vector<16x32xf32>
      %c0_47 = arith.constant 0 : index
      %c0_48 = arith.constant 0 : index
      %c0_49 = arith.constant 0 : index
      %67 = vector.load %arg11[%c0_47, %c0_48, %c0_49] : memref<1x16x32xf32, #tpu.memory_space<vmem>>, vector<1x16x32xf32>
      %68 = vector.shape_cast %67 : vector<1x16x32xf32> to vector<16x32xf32>
      %69 = vector.shape_cast %66 : vector<16x32xf32> to vector<1x16x32xf32>
      tpu.vector_store %arg11[%c0_47, %c0_48, %c0_49], %69 {strides = array<i32>} : memref<1x16x32xf32, #tpu.memory_space<vmem>>, vector<1x16x32xf32>,
    } else {
    }
    %c0 = arith.constant 0 : index
    %c0_1 = arith.constant 0 : index
    %3 = vector.load %arg13[%c0, %c0_1] : memref<16x16xi32, #tpu.memory_space<vmem>>, vector<16x16xi32>
    %c0_2 = arith.constant 0 : index
    %c0_3 = arith.constant 0 : index
    %4 = vector.load %arg3[%c0_2, %c0_3] : memref<16x1xi32, #tpu.memory_space<vmem>>, vector<16x1xi32>
    %5 = vector.broadcast %4 : vector<16x1xi32> to vector<16x16xi32>
    %6 = arith.cmpi eq, %3, %5 : vector<16x16xi32>
    %7 = arith.extui %6 : vector<16x16xi1> to vector<16x16xi32>
    %8 = arith.sitofp %7 : vector<16x16xi32> to vector<16x16xf32>
    %c0_4 = arith.constant 0 : index
    %c0_5 = arith.constant 0 : index
    %9 = vector.load %arg12[%c0_4, %c0_5] : memref<16x32xf32, #tpu.memory_space<vmem>>, vector<16x32xf32>
    %cst = arith.constant dense<0.000000e+00> : vector<16x32xf32>
    %10 = tpu.matmul %8, %9, %cst {dimension_numbers = #tpu.dot_dimension_numbers<[1], [0], [0], [1], [0, 0, 1, 1], [], []>} : vector<16x16xf32>, vector<16x32xf32>, vector<16x32xf32> -> vector<16x32xf32>
    %c0_6 = arith.constant 0 : index
    %c0_7 = arith.constant 0 : index
    %11 = vector.load %arg5[%c0_6, %c0_7] : memref<16x32xf32, #tpu.memory_space<vmem>>, vector<16x32xf32>
    %c0_8 = arith.constant 0 : index
    %c0_9 = arith.constant 0 : index
    %12 = vector.load %arg7[%c0_8, %c0_9] : memref<32x32xf32, #tpu.memory_space<vmem>>, vector<32x32xf32>
    %cst_10 = arith.constant dense<0.000000e+00> : vector<16x32xf32>
    %13 = tpu.matmul %11, %12, %cst_10 {dimension_numbers = #tpu.dot_dimension_numbers<[1], [0], [0], [1], [0, 0, 1, 1], [], []>} : vector<16x32xf32>, vector<32x32xf32>, vector<16x32xf32> -> vector<16x32xf32>
    %14 = arith.addf %10, %13 : vector<16x32xf32>
    %c0_11 = arith.constant 0 : index
    %c0_12 = arith.constant 0 : index
    %15 = vector.load %arg8[%c0_11, %c0_12] : memref<1x32xf32, #tpu.memory_space<vmem>>, vector<1x32xf32>
    %16 = vector.broadcast %15 : vector<1x32xf32> to vector<16x32xf32>
    %17 = arith.addf %14, %16 : vector<16x32xf32>
    %c0_13 = arith.constant 0 : index
    %c0_14 = arith.constant 0 : index
    %18 = vector.load %arg9[%c0_13, %c0_14] : memref<1x32xf32, #tpu.memory_space<vmem>>, vector<1x32xf32>
    %c0_15 = arith.constant 0 : index
    %c0_16 = arith.constant 0 : index
    %19 = vector.load %arg10[%c0_15, %c0_16] : memref<1x32xf32, #tpu.memory_space<vmem>>, vector<1x32xf32>
    %cst_17 = arith.constant dense<0.000000e+00> : vector<16xf32>
    %20 = vector.multi_reduction <add>, %17, %cst_17 [1] : vector<16x32xf32> to vector<16xf32>
    %21 = vector.shape_cast %20 : vector<16xf32> to vector<16x1xf32>
    %cst_18 = arith.constant 3.200000e+01 : f32
    %22 = vector.broadcast %cst_18 : f32 to vector<16x1xf32>
    %23 = arith.divf %21, %22 : vector<16x1xf32>
    %24 = vector.broadcast %23 : vector<16x1xf32> to vector<16x32xf32>
    %25 = arith.subf %17, %24 : vector<16x32xf32>
    %26 = arith.mulf %25, %25 : vector<16x32xf32>
    %cst_19 = arith.constant dense<0.000000e+00> : vector<16xf32>
    %27 = vector.multi_reduction <add>, %26, %cst_19 [1] : vector<16x32xf32> to vector<16xf32>
    %28 = vector.shape_cast %27 : vector<16xf32> to vector<16x1xf32>
    %cst_20 = arith.constant 3.200000e+01 : f32
    %29 = vector.broadcast %cst_20 : f32 to vector<16x1xf32>
    %30 = arith.divf %28, %29 : vector<16x1xf32>
    %31 = vector.broadcast %23 : vector<16x1xf32> to vector<16x32xf32>
    %32 = arith.subf %17, %31 : vector<16x32xf32>
    %cst_21 = arith.constant 9.99999974E-6 : f32
    %33 = vector.broadcast %cst_21 : f32 to vector<16x1xf32>
    %34 = arith.addf %30, %33 : vector<16x1xf32>
    %35 = math.rsqrt %34 : vector<16x1xf32>
    %36 = vector.broadcast %35 : vector<16x1xf32> to vector<16x32xf32>
    %37 = arith.mulf %32, %36 : vector<16x32xf32>
    %38 = vector.broadcast %18 : vector<1x32xf32> to vector<16x32xf32>
    %39 = arith.mulf %37, %38 : vector<16x32xf32>
    %40 = vector.broadcast %19 : vector<1x32xf32> to vector<16x32xf32>
    %41 = arith.addf %39, %40 : vector<16x32xf32>
    %cst_22 = arith.constant 0.000000e+00 : f32
    %42 = vector.broadcast %cst_22 : f32 to vector<16x32xf32>
    %43 = arith.maximumf %41, %42 : vector<16x32xf32>
    %c0_23 = arith.constant 0 : index
    %c0_24 = arith.constant 0 : index
    %44 = vector.load %arg14[%c0_23, %c0_24] : memref<16x16xi32, #tpu.memory_space<vmem>>, vector<16x16xi32>
    %c0_25 = arith.constant 0 : index
    %c0_26 = arith.constant 0 : index
    %c0_27 = arith.constant 0 : index
    %45 = vector.load %arg4[%c0_25, %c0_26, %c0_27] : memref<1x1x16xi32, #tpu.memory_space<vmem>>, vector<1x1x16xi32>
    %46 = vector.shape_cast %45 : vector<1x1x16xi32> to vector<1x16xi32>
    %47 = vector.broadcast %46 : vector<1x16xi32> to vector<16x16xi32>
    %48 = arith.cmpi eq, %44, %47 : vector<16x16xi32>
    %49 = arith.extui %48 : vector<16x16xi1> to vector<16x16xi32>
    %50 = arith.sitofp %49 : vector<16x16xi32> to vector<16x16xf32>
    %c0_28 = arith.constant 0 : index
    %c0_29 = arith.constant 0 : index
    %c0_30 = arith.constant 0 : index
    %51 = vector.load %arg11[%c0_28, %c0_29, %c0_30] : memref<1x16x32xf32, #tpu.memory_space<vmem>>, vector<1x16x32xf32>
    %52 = vector.shape_cast %51 : vector<1x16x32xf32> to vector<16x32xf32>
    %cst_31 = arith.constant dense<0.000000e+00> : vector<16x32xf32>
    %53 = tpu.matmul %50, %43, %cst_31 {dimension_numbers = #tpu.dot_dimension_numbers<[1], [0], [0], [1], [0, 0, 1, 1], [], []>} : vector<16x16xf32>, vector<16x32xf32>, vector<16x32xf32> -> vector<16x32xf32>
    %54 = arith.addf %52, %53 : vector<16x32xf32>
    %c0_32 = arith.constant 0 : index
    %c0_33 = arith.constant 0 : index
    %c0_34 = arith.constant 0 : index
    %55 = vector.load %arg11[%c0_32, %c0_33, %c0_34] : memref<1x16x32xf32, #tpu.memory_space<vmem>>, vector<1x16x32xf32>
    %56 = vector.shape_cast %55 : vector<1x16x32xf32> to vector<16x32xf32>
    %57 = vector.shape_cast %54 : vector<16x32xf32> to vector<1x16x32xf32>
    tpu.vector_store %arg11[%c0_32, %c0_33, %c0_34], %57 {strides = array<i32>} : memref<1x16x32xf32, #tpu.memory_space<vmem>>, vector<1x16x32xf32>,
    return
  }
  func.func @transform_0(%arg0: i32, %arg1: i32) -> (i32, i32) {
    %c0_i32 = arith.constant 0 : i32
    %c0_i32_0 = arith.constant 0 : i32
    %c0_i32_1 = arith.constant 0 : i32
    return %c0_i32, %c0_i32_0 : i32, i32
  }
  func.func @transform_1(%arg0: i32, %arg1: i32) -> (i32, i32) {
    %c2_i32 = arith.constant 2 : i32
    %0 = arith.muli %arg0, %c2_i32 : i32
    %1 = arith.addi %0, %arg1 : i32
    %c0_i32 = arith.constant 0 : i32
    %c0_i32_0 = arith.constant 0 : i32
    return %1, %c0_i32 : i32, i32
  }
  func.func @transform_2(%arg0: i32, %arg1: i32) -> (i32, i32, i32) {
    %c2_i32 = arith.constant 2 : i32
    %0 = arith.muli %arg0, %c2_i32 : i32
    %1 = arith.addi %0, %arg1 : i32
    %c0_i32 = arith.constant 0 : i32
    %c0_i32_0 = arith.constant 0 : i32
    %c0_i32_1 = arith.constant 0 : i32
    return %1, %c0_i32, %c0_i32_0 : i32, i32, i32
  }
  func.func @transform_3(%arg0: i32, %arg1: i32) -> (i32, i32) {
    %c2_i32 = arith.constant 2 : i32
    %0 = arith.muli %arg0, %c2_i32 : i32
    %1 = arith.addi %0, %arg1 : i32
    %c0_i32 = arith.constant 0 : i32
    %c0_i32_0 = arith.constant 0 : i32
    return %1, %c0_i32 : i32, i32
  }
  func.func @transform_4(%arg0: i32, %arg1: i32) -> (i32, i32) {
    %c0_i32 = arith.constant 0 : i32
    %c0_i32_0 = arith.constant 0 : i32
    %c0_i32_1 = arith.constant 0 : i32
    return %c0_i32, %c0_i32_0 : i32, i32
  }
  func.func @transform_5(%arg0: i32, %arg1: i32) -> (i32, i32) {
    %c0_i32 = arith.constant 0 : i32
    %c0_i32_0 = arith.constant 0 : i32
    %c0_i32_1 = arith.constant 0 : i32
    return %c0_i32, %c0_i32_0 : i32, i32
  }
  func.func @transform_6(%arg0: i32, %arg1: i32) -> (i32, i32) {
    %c0_i32 = arith.constant 0 : i32
    %c0_i32_0 = arith.constant 0 : i32
    %c0_i32_1 = arith.constant 0 : i32
    return %c0_i32, %c0_i32_0 : i32, i32
  }
  func.func @transform_7(%arg0: i32, %arg1: i32) -> (i32, i32) {
    %c0_i32 = arith.constant 0 : i32
    %c0_i32_0 = arith.constant 0 : i32
    %c0_i32_1 = arith.constant 0 : i32
    return %c0_i32, %c0_i32_0 : i32, i32
  }
  func.func @transform_8(%arg0: i32, %arg1: i32) -> (i32, i32) {
    %c0_i32 = arith.constant 0 : i32
    %c0_i32_0 = arith.constant 0 : i32
    %c0_i32_1 = arith.constant 0 : i32
    return %c0_i32, %c0_i32_0 : i32, i32
  }
  func.func @transform_9(%arg0: i32, %arg1: i32) -> (i32, i32, i32) {
    %c0_i32 = arith.constant 0 : i32
    %c0_i32_0 = arith.constant 0 : i32
    %c0_i32_1 = arith.constant 0 : i32
    return %arg0, %c0_i32, %c0_i32_0 : i32, i32, i32
  }
}

module attributes {stable_mosaic.version = 11 : i64} {
  func.func @gin_node_kernel(%arg0: i32, %arg1: memref<8x32xf32, #tpu.memory_space<vmem>>, %arg2: memref<2x8x32xf32, #tpu.memory_space<vmem>>, %arg3: memref<1xf32, #tpu.memory_space<smem>>, %arg4: memref<32x32xf32, #tpu.memory_space<vmem>>, %arg5: memref<1x32xf32, #tpu.memory_space<vmem>>, %arg6: memref<1x32xf32, #tpu.memory_space<vmem>>, %arg7: memref<1x32xf32, #tpu.memory_space<vmem>>, %arg8: memref<32x128xf32, #tpu.memory_space<vmem>>, %arg9: memref<32x128xf32, #tpu.memory_space<vmem>>, %arg10: memref<1x128xf32, #tpu.memory_space<vmem>>, %arg11: memref<8x128xf32, #tpu.memory_space<vmem>>) attributes {dimension_semantics = [#tpu.dimension_semantics<parallel>], iteration_bounds = array<i64: 2>, scalar_prefetch = 0 : i64, scratch_operands = 0 : i64, tpu.core_type = #tpu.core_type<tc>, window_params = [{transform_indices = @transform_0, window_bounds = array<i64: 8, 32>}, {transform_indices = @transform_1, window_bounds = array<i64: 2, 8, 32>}, {transform_indices = @transform_2, window_bounds = array<i64: 1>}, {pipeline_mode = #tpu.pipeline_mode<synchronous>, transform_indices = @transform_3, window_bounds = array<i64: 32, 32>}, {pipeline_mode = #tpu.pipeline_mode<synchronous>, transform_indices = @transform_4, window_bounds = array<i64: 1, 32>}, {pipeline_mode = #tpu.pipeline_mode<synchronous>, transform_indices = @transform_5, window_bounds = array<i64: 1, 32>}, {pipeline_mode = #tpu.pipeline_mode<synchronous>, transform_indices = @transform_6, window_bounds = array<i64: 1, 32>}, {pipeline_mode = #tpu.pipeline_mode<synchronous>, transform_indices = @transform_7, window_bounds = array<i64: 32, 128>}, {pipeline_mode = #tpu.pipeline_mode<synchronous>, transform_indices = @transform_8, window_bounds = array<i64: 32, 128>}, {pipeline_mode = #tpu.pipeline_mode<synchronous>, transform_indices = @transform_9, window_bounds = array<i64: 1, 128>}, {transform_indices = @transform_10, window_bounds = array<i64: 8, 128>}]} {
    %c0 = arith.constant 0 : index
    %c0_0 = arith.constant 0 : index
    %0 = vector.load %arg1[%c0, %c0_0] : memref<8x32xf32, #tpu.memory_space<vmem>>, vector<8x32xf32>
    %c0_1 = arith.constant 0 : index
    %c0_2 = arith.constant 0 : index
    %c0_3 = arith.constant 0 : index
    %1 = vector.load %arg2[%c0_1, %c0_2, %c0_3] : memref<2x8x32xf32, #tpu.memory_space<vmem>>, vector<2x8x32xf32>
    %cst = arith.constant dense<0.000000e+00> : vector<8x32xf32>
    %2 = vector.multi_reduction <add>, %1, %cst [0] : vector<2x8x32xf32> to vector<8x32xf32>
    %c0_4 = arith.constant 0 : index
    %3 = memref.load %arg3[%c0_4] : memref<1xf32, #tpu.memory_space<smem>>
    %cst_5 = arith.constant 1.000000e+00 : f32
    %4 = arith.addf %cst_5, %3 : f32
    %5 = vector.broadcast %4 : f32 to vector<8x32xf32>
    %6 = arith.mulf %5, %0 : vector<8x32xf32>
    %7 = arith.addf %6, %2 : vector<8x32xf32>
    %c0_6 = arith.constant 0 : index
    %c0_7 = arith.constant 0 : index
    %8 = vector.load %arg4[%c0_6, %c0_7] : memref<32x32xf32, #tpu.memory_space<vmem>>, vector<32x32xf32>
    %cst_8 = arith.constant dense<0.000000e+00> : vector<8x32xf32>
    %9 = tpu.matmul %7, %8, %cst_8 {dimension_numbers = #tpu.dot_dimension_numbers<[1], [0], [0], [1], [0, 0, 1, 1], [], []>} : vector<8x32xf32>, vector<32x32xf32>, vector<8x32xf32> -> vector<8x32xf32>
    %c0_9 = arith.constant 0 : index
    %c0_10 = arith.constant 0 : index
    %10 = vector.load %arg5[%c0_9, %c0_10] : memref<1x32xf32, #tpu.memory_space<vmem>>, vector<1x32xf32>
    %11 = vector.broadcast %10 : vector<1x32xf32> to vector<8x32xf32>
    %12 = arith.addf %9, %11 : vector<8x32xf32>
    %c0_11 = arith.constant 0 : index
    %c0_12 = arith.constant 0 : index
    %13 = vector.load %arg6[%c0_11, %c0_12] : memref<1x32xf32, #tpu.memory_space<vmem>>, vector<1x32xf32>
    %c0_13 = arith.constant 0 : index
    %c0_14 = arith.constant 0 : index
    %14 = vector.load %arg7[%c0_13, %c0_14] : memref<1x32xf32, #tpu.memory_space<vmem>>, vector<1x32xf32>
    %cst_15 = arith.constant dense<0.000000e+00> : vector<8xf32>
    %15 = vector.multi_reduction <add>, %12, %cst_15 [1] : vector<8x32xf32> to vector<8xf32>
    %16 = vector.shape_cast %15 : vector<8xf32> to vector<8x1xf32>
    %cst_16 = arith.constant 3.200000e+01 : f32
    %17 = vector.broadcast %cst_16 : f32 to vector<8x1xf32>
    %18 = arith.divf %16, %17 : vector<8x1xf32>
    %19 = vector.broadcast %18 : vector<8x1xf32> to vector<8x32xf32>
    %20 = arith.subf %12, %19 : vector<8x32xf32>
    %21 = arith.mulf %20, %20 : vector<8x32xf32>
    %cst_17 = arith.constant dense<0.000000e+00> : vector<8xf32>
    %22 = vector.multi_reduction <add>, %21, %cst_17 [1] : vector<8x32xf32> to vector<8xf32>
    %23 = vector.shape_cast %22 : vector<8xf32> to vector<8x1xf32>
    %cst_18 = arith.constant 3.200000e+01 : f32
    %24 = vector.broadcast %cst_18 : f32 to vector<8x1xf32>
    %25 = arith.divf %23, %24 : vector<8x1xf32>
    %26 = vector.broadcast %18 : vector<8x1xf32> to vector<8x32xf32>
    %27 = arith.subf %12, %26 : vector<8x32xf32>
    %cst_19 = arith.constant 9.99999974E-6 : f32
    %28 = vector.broadcast %cst_19 : f32 to vector<8x1xf32>
    %29 = arith.addf %25, %28 : vector<8x1xf32>
    %30 = math.rsqrt %29 : vector<8x1xf32>
    %31 = vector.broadcast %30 : vector<8x1xf32> to vector<8x32xf32>
    %32 = arith.mulf %27, %31 : vector<8x32xf32>
    %33 = vector.broadcast %13 : vector<1x32xf32> to vector<8x32xf32>
    %34 = arith.mulf %32, %33 : vector<8x32xf32>
    %35 = vector.broadcast %14 : vector<1x32xf32> to vector<8x32xf32>
    %36 = arith.addf %34, %35 : vector<8x32xf32>
    %cst_20 = arith.constant 0.000000e+00 : f32
    %37 = vector.broadcast %cst_20 : f32 to vector<8x32xf32>
    %38 = arith.maximumf %36, %37 : vector<8x32xf32>
    %c0_21 = arith.constant 0 : index
    %c0_22 = arith.constant 0 : index
    %39 = vector.load %arg8[%c0_21, %c0_22] : memref<32x128xf32, #tpu.memory_space<vmem>>, vector<32x128xf32>
    %cst_23 = arith.constant dense<0.000000e+00> : vector<8x128xf32>
    %40 = tpu.matmul %38, %39, %cst_23 {dimension_numbers = #tpu.dot_dimension_numbers<[1], [0], [0], [1], [0, 0, 1, 1], [], []>} : vector<8x32xf32>, vector<32x128xf32>, vector<8x128xf32> -> vector<8x128xf32>
    %c0_24 = arith.constant 0 : index
    %c0_25 = arith.constant 0 : index
    %41 = vector.load %arg9[%c0_24, %c0_25] : memref<32x128xf32, #tpu.memory_space<vmem>>, vector<32x128xf32>
    %cst_26 = arith.constant dense<0.000000e+00> : vector<8x128xf32>
    %42 = tpu.matmul %0, %41, %cst_26 {dimension_numbers = #tpu.dot_dimension_numbers<[1], [0], [0], [1], [0, 0, 1, 1], [], []>} : vector<8x32xf32>, vector<32x128xf32>, vector<8x128xf32> -> vector<8x128xf32>
    %43 = arith.addf %40, %42 : vector<8x128xf32>
    %c0_27 = arith.constant 0 : index
    %c0_28 = arith.constant 0 : index
    %44 = vector.load %arg10[%c0_27, %c0_28] : memref<1x128xf32, #tpu.memory_space<vmem>>, vector<1x128xf32>
    %45 = vector.broadcast %44 : vector<1x128xf32> to vector<8x128xf32>
    %46 = arith.addf %43, %45 : vector<8x128xf32>
    %c0_29 = arith.constant 0 : index
    %c0_30 = arith.constant 0 : index
    %47 = vector.load %arg11[%c0_29, %c0_30] : memref<8x128xf32, #tpu.memory_space<vmem>>, vector<8x128xf32>
    tpu.vector_store %arg11[%c0_29, %c0_30], %46 {strides = array<i32>} : memref<8x128xf32, #tpu.memory_space<vmem>>, vector<8x128xf32>,
    return
  }
  func.func @transform_0(%arg0: i32) -> (i32, i32) {
    %c0_i32 = arith.constant 0 : i32
    %c0_i32_0 = arith.constant 0 : i32
    return %arg0, %c0_i32 : i32, i32
  }
  func.func @transform_1(%arg0: i32) -> (i32, i32, i32) {
    %c0_i32 = arith.constant 0 : i32
    %c0_i32_0 = arith.constant 0 : i32
    %c0_i32_1 = arith.constant 0 : i32
    return %c0_i32, %arg0, %c0_i32_0 : i32, i32, i32
  }
  func.func @transform_2(%arg0: i32) -> i32 {
    %c0_i32 = arith.constant 0 : i32
    %c0_i32_0 = arith.constant 0 : i32
    return %c0_i32 : i32
  }
  func.func @transform_3(%arg0: i32) -> (i32, i32) {
    %c0_i32 = arith.constant 0 : i32
    %c0_i32_0 = arith.constant 0 : i32
    %c0_i32_1 = arith.constant 0 : i32
    return %c0_i32, %c0_i32_0 : i32, i32
  }
  func.func @transform_4(%arg0: i32) -> (i32, i32) {
    %c0_i32 = arith.constant 0 : i32
    %c0_i32_0 = arith.constant 0 : i32
    %c0_i32_1 = arith.constant 0 : i32
    return %c0_i32, %c0_i32_0 : i32, i32
  }
  func.func @transform_5(%arg0: i32) -> (i32, i32) {
    %c0_i32 = arith.constant 0 : i32
    %c0_i32_0 = arith.constant 0 : i32
    %c0_i32_1 = arith.constant 0 : i32
    return %c0_i32, %c0_i32_0 : i32, i32
  }
  func.func @transform_6(%arg0: i32) -> (i32, i32) {
    %c0_i32 = arith.constant 0 : i32
    %c0_i32_0 = arith.constant 0 : i32
    %c0_i32_1 = arith.constant 0 : i32
    return %c0_i32, %c0_i32_0 : i32, i32
  }
  func.func @transform_7(%arg0: i32) -> (i32, i32) {
    %c0_i32 = arith.constant 0 : i32
    %c0_i32_0 = arith.constant 0 : i32
    %c0_i32_1 = arith.constant 0 : i32
    return %c0_i32, %c0_i32_0 : i32, i32
  }
  func.func @transform_8(%arg0: i32) -> (i32, i32) {
    %c0_i32 = arith.constant 0 : i32
    %c0_i32_0 = arith.constant 0 : i32
    %c0_i32_1 = arith.constant 0 : i32
    return %c0_i32, %c0_i32_0 : i32, i32
  }
  func.func @transform_9(%arg0: i32) -> (i32, i32) {
    %c0_i32 = arith.constant 0 : i32
    %c0_i32_0 = arith.constant 0 : i32
    %c0_i32_1 = arith.constant 0 : i32
    return %c0_i32, %c0_i32_0 : i32, i32
  }
  func.func @transform_10(%arg0: i32) -> (i32, i32) {
    %c0_i32 = arith.constant 0 : i32
    %c0_i32_0 = arith.constant 0 : i32
    return %arg0, %c0_i32 : i32, i32
  }
}

</mosaic_0001>

<llo_original>
// kernel: gin_forward.2
$region0: #{gin_forward.2}
  #allocation0 [shape = 'u32[]', space=smem, size = 0x4, offset = 0x4, fixed_abs, tag = 'smem constant byte address 0x4 - core index']
  #allocation1 [shape = 'u32[144,128]{1,0:T(1,128)}', space=vmem, size = 0x12000, scoped, tag = 'internal scratch']
  #allocation2 [shape = 'f32[16,32]{1,0:T(8,128)}', space=vmem, size = 0x2000, scoped, tag = 'scratch operand']
  #allocation3 [shape = 's32[16,16]{1,0:T(8,128)}', space=vmem, size = 0x2000, scoped, tag = 'scratch operand']
  #allocation4 [shape = 's32[16,16]{1,0:T(8,128)}', space=vmem, size = 0x2000, scoped, tag = 'scratch operand']
  %s0 = inlined_call_operand.vmem [shape: f32[16,32], index: 0, kind: input, shape index: {}]
  %s1 = inlined_call_operand.vmem [shape: s32[64,1], index: 1, kind: input, shape index: {}]
  %s2 = inlined_call_operand.vmem [shape: s32[4,1,16], index: 2, kind: input, shape index: {}]
  %s3 = inlined_call_operand.vmem [shape: f32[64,32], index: 3, kind: input, shape index: {}]
  %s4 = inlined_call_operand.vmem [shape: f32[32,32], index: 4, kind: input, shape index: {}]
  %s5 = inlined_call_operand.vmem [shape: f32[32,32], index: 5, kind: input, shape index: {}]
  %s6 = inlined_call_operand.vmem [shape: f32[1,32], index: 6, kind: input, shape index: {}]
  %s7 = inlined_call_operand.vmem [shape: f32[1,32], index: 7, kind: input, shape index: {}]
  %s8 = inlined_call_operand.vmem [shape: f32[1,32], index: 8, kind: input, shape index: {}]
  %s9 = inlined_call_operand.vmem [shape: f32[2,16,32], index: 9, kind: output, shape index: {}]
  %s10 = sld [smem:[#allocation0]]
  $region73: #{gin_forward.2} parent=0
    _
  %s12 = ssub.s32 1, %s10
  %s13 = scalar_select 0, %s12, %s10
  loop: start=0, step=1, limit=6
  $region2: #{gin_forward.2} parent=0 // loop_pre_header
    _
  $region3: #{gin_forward.2} parent=0 // loop_header
    %s15 = sphi 0, %s19
    %p16 = scmp.ge.s32.totalorder %s15, 6
    %s22 = sphi 0, %s34
    %s23 = sphi 0, %s30
    %s24 = sphi 0, %s22
    %s25 = sphi 0, %s23
    %s26 = sphi 0, %s24
    %s27 = sphi 0, %s25
    %s35 = sphi 0, %s35
    %s37 = sphi 0, %s35
    %s38 = sphi 0, %s37
    %s52 = sphi 0, %s38
    %s62 = sphi 0, %s64
    %s65 = sphi 0, %s62
    %s66 = sphi 0, %s65
    %s82 = sphi 0, %s66
    %s92 = sphi 0, %s94
    %s95 = sphi 0, %s92
    %s96 = sphi 0, %s95
    %s112 = sphi 0, %s96
    %s122 = sphi 0, %s124
    %s125 = sphi 0, %s122
    %s126 = sphi 0, %s125
    %s142 = sphi 0, %s126
    %s146 = sphi 0, %s146
    %s148 = sphi 0, %s146
    %s149 = sphi 0, %s148
    %s163 = sphi 0, %s149
    %s167 = sphi 0, %s167
    %s169 = sphi 0, %s167
    %s170 = sphi 0, %s169
    %s184 = sphi 0, %s170
    %s188 = sphi 0, %s188
    %s190 = sphi 0, %s188
    %s191 = sphi 0, %s190
    %s205 = sphi 0, %s191
    %s209 = sphi 0, %s209
    %s211 = sphi 0, %s209
    %s212 = sphi 0, %s211
    %s226 = sphi 0, %s212
    %s230 = sphi 0, %s230
    %s232 = sphi 0, %s230
    %s233 = sphi 0, %s232
    %s247 = sphi 0, %s233
    %s253 = sphi 0, %s255
    %s256 = sphi 0, %s253
    %s257 = sphi 0, %s256
    %s273 = sphi 0, %s257
  $region4: #{gin_forward.2} parent=0 // loop_header_branch
    %18 = sbr.rel (%p16) target = $region8
  $region5: #{gin_forward.2} parent=0 // loop_body
    %s20 = ssub.s32 %s15, 1
    %s21 = ssub.s32 %s15, 2
    %s28 = sadd.s32 1, %s23
    %p29 = scmp.ge.s32.totalorder %s28, 2
    %s30 = scalar_select %p29, 0, %s28
    %s31 = sadd.s32 1, %s22
    %s32 = scalar_select %p29, %s31, %s22
    %p33 = scmp.ge.s32.totalorder %s32, 2
    %s34 = scalar_select %p33, 0, %s32
    %s36 = sadd.s32 %s35, 1
    %p39 = scmp.eq.s32.totalorder %s15, 3
    %p40 = scmp.ne.s32.totalorder %s35, %s37
    %p41 = scmp.eq.s32.totalorder %s15, 0
    %p42 = por %p40, %p41
    %p43 = scmp.ne.s32.totalorder %s35, %s37
    %p44 = scmp.eq.s32.totalorder %s20, 3
    %p45 = por %p43, %p44
    %p46 = scmp.ne.s32.totalorder %s37, %s38
    %p47 = scmp.eq.s32.totalorder %s20, 0
    %p48 = por %p46, %p47
    %p49 = scmp.ne.s32.totalorder %s37, %s38
    %p50 = scmp.eq.s32.totalorder %s21, 3
    %p51 = por %p49, %p50
    %p53 = scmp.ne.s32.totalorder %s38, %s52
    %p54 = scmp.eq.s32.totalorder %s21, 0
    %p55 = por %p53, %p54
    %s56 = smul.u32 %s22, 2
    %s57 = sadd.s32 %s56, %s23
    %s58 = smul.u32 %s34, 2
    %s59 = sadd.s32 %s58, %s30
    %s60 = ssub.s32 %s57, %s59
    %p61 = scmp.eq.s32.totalorder %s60, 0
    %s63 = sadd.s32 %s62, 1
    %s64 = scalar_select %p61, %s62, %s63
    %p67 = pneg %p61
    %p68 = scmp.eq.s32.totalorder %s15, 3
    %p69 = por %p67, %p68
    %p70 = scmp.ne.s32.totalorder %s62, %s65
    %p71 = scmp.eq.s32.totalorder %s15, 0
    %p72 = por %p70, %p71
    %p73 = scmp.ne.s32.totalorder %s62, %s65
    %p74 = scmp.eq.s32.totalorder %s20, 3
    %p75 = por %p73, %p74
    %p76 = scmp.ne.s32.totalorder %s65, %s66
    %p77 = scmp.eq.s32.totalorder %s20, 0
    %p78 = por %p76, %p77
    %p79 = scmp.ne.s32.totalorder %s65, %s66
    %p80 = scmp.eq.s32.totalorder %s21, 3
    %p81 = por %p79, %p80
    %p83 = scmp.ne.s32.totalorder %s66, %s82
    %p84 = scmp.eq.s32.totalorder %s21, 0
    %p85 = por %p83, %p84
    %s86 = smul.u32 %s22, 2
    %s87 = sadd.s32 %s86, %s23
    %s88 = smul.u32 %s34, 2
    %s89 = sadd.s32 %s88, %s30
    %s90 = ssub.s32 %s87, %s89
    %p91 = scmp.eq.s32.totalorder %s90, 0
    %s93 = sadd.s32 %s92, 1
    %s94 = scalar_select %p91, %s92, %s93
    %p97 = pneg %p91
    %p98 = scmp.eq.s32.totalorder %s15, 3
    %p99 = por %p97, %p98
    %p100 = scmp.ne.s32.totalorder %s92, %s95
    %p101 = scmp.eq.s32.totalorder %s15, 0
    %p102 = por %p100, %p101
    %p103 = scmp.ne.s32.totalorder %s92, %s95
    %p104 = scmp.eq.s32.totalorder %s20, 3
    %p105 = por %p103, %p104
    %p106 = scmp.ne.s32.totalorder %s95, %s96
    %p107 = scmp.eq.s32.totalorder %s20, 0
    %p108 = por %p106, %p107
    %p109 = scmp.ne.s32.totalorder %s95, %s96
    %p110 = scmp.eq.s32.totalorder %s21, 3
    %p111 = por %p109, %p110
    %p113 = scmp.ne.s32.totalorder %s96, %s112
    %p114 = scmp.eq.s32.totalorder %s21, 0
    %p115 = por %p113, %p114
    %s116 = smul.u32 %s22, 2
    %s117 = sadd.s32 %s116, %s23
    %s118 = smul.u32 %s34, 2
    %s119 = sadd.s32 %s118, %s30
    %s120 = ssub.s32 %s117, %s119
    %p121 = scmp.eq.s32.totalorder %s120, 0
    %s123 = sadd.s32 %s122, 1
    %s124 = scalar_select %p121, %s122, %s123
    %p127 = pneg %p121
    %p128 = scmp.eq.s32.totalorder %s15, 3
    %p129 = por %p127, %p128
    %p130 = scmp.ne.s32.totalorder %s122, %s125
    %p131 = scmp.eq.s32.totalorder %s15, 0
    %p132 = por %p130, %p131
    %p133 = scmp.ne.s32.totalorder %s122, %s125
    %p134 = scmp.eq.s32.totalorder %s20, 3
    %p135 = por %p133, %p134
    %p136 = scmp.ne.s32.totalorder %s125, %s126
    %p137 = scmp.eq.s32.totalorder %s20, 0
    %p138 = por %p136, %p137
    %p139 = scmp.ne.s32.totalorder %s125, %s126
    %p140 = scmp.eq.s32.totalorder %s21, 3
    %p141 = por %p139, %p140
    %p143 = scmp.ne.s32.totalorder %s126, %s142
    %p144 = scmp.eq.s32.totalorder %s21, 0
    %p145 = por %p143, %p144
    %s147 = sadd.s32 %s146, 1
    %p150 = scmp.eq.s32.totalorder %s15, 3
    %p151 = scmp.ne.s32.totalorder %s146, %s148
    %p152 = scmp.eq.s32.totalorder %s15, 0
    %p153 = por %p151, %p152
    %p154 = scmp.ne.s32.totalorder %s146, %s148
    %p155 = scmp.eq.s32.totalorder %s20, 3
    %p156 = por %p154, %p155
    %p157 = scmp.ne.s32.totalorder %s148, %s149
    %p158 = scmp.eq.s32.totalorder %s20, 0
    %p159 = por %p157, %p158
    %p160 = scmp.ne.s32.totalorder %s148, %s149
    %p161 = scmp.eq.s32.totalorder %s21, 3
    %p162 = por %p160, %p161
    %p164 = scmp.ne.s32.totalorder %s149, %s163
    %p165 = scmp.eq.s32.totalorder %s21, 0
    %p166 = por %p164, %p165
    %s168 = sadd.s32 %s167, 1
    %p171 = scmp.eq.s32.totalorder %s15, 3
    %p172 = scmp.ne.s32.totalorder %s167, %s169
    %p173 = scmp.eq.s32.totalorder %s15, 0
    %p174 = por %p172, %p173
    %p175 = scmp.ne.s32.totalorder %s167, %s169
    %p176 = scmp.eq.s32.totalorder %s20, 3
    %p177 = por %p175, %p176
    %p178 = scmp.ne.s32.totalorder %s169, %s170
    %p179 = scmp.eq.s32.totalorder %s20, 0
    %p180 = por %p178, %p179
    %p181 = scmp.ne.s32.totalorder %s169, %s170
    %p182 = scmp.eq.s32.totalorder %s21, 3
    %p183 = por %p181, %p182
    %p185 = scmp.ne.s32.totalorder %s170, %s184
    %p186 = scmp.eq.s32.totalorder %s21, 0
    %p187 = por %p185, %p186
    %s189 = sadd.s32 %s188, 1
    %p192 = scmp.eq.s32.totalorder %s15, 3
    %p193 = scmp.ne.s32.totalorder %s188, %s190
    %p194 = scmp.eq.s32.totalorder %s15, 0
    %p195 = por %p193, %p194
    %p196 = scmp.ne.s32.totalorder %s188, %s190
    %p197 = scmp.eq.s32.totalorder %s20, 3
    %p198 = por %p196, %p197
    %p199 = scmp.ne.s32.totalorder %s190, %s191
    %p200 = scmp.eq.s32.totalorder %s20, 0
    %p201 = por %p199, %p200
    %p202 = scmp.ne.s32.totalorder %s190, %s191
    %p203 = scmp.eq.s32.totalorder %s21, 3
    %p204 = por %p202, %p203
    %p206 = scmp.ne.s32.totalorder %s191, %s205
    %p207 = scmp.eq.s32.totalorder %s21, 0
    %p208 = por %p206, %p207
    %s210 = sadd.s32 %s209, 1
    %p213 = scmp.eq.s32.totalorder %s15, 3
    %p214 = scmp.ne.s32.totalorder %s209, %s211
    %p215 = scmp.eq.s32.totalorder %s15, 0
    %p216 = por %p214, %p215
    %p217 = scmp.ne.s32.totalorder %s209, %s211
    %p218 = scmp.eq.s32.totalorder %s20, 3
    %p219 = por %p217, %p218
    %p220 = scmp.ne.s32.totalorder %s211, %s212
    %p221 = scmp.eq.s32.totalorder %s20, 0
    %p222 = por %p220, %p221
    %p223 = scmp.ne.s32.totalorder %s211, %s212
    %p224 = scmp.eq.s32.totalorder %s21, 3
    %p225 = por %p223, %p224
    %p227 = scmp.ne.s32.totalorder %s212, %s226
    %p228 = scmp.eq.s32.totalorder %s21, 0
    %p229 = por %p227, %p228
    %s231 = sadd.s32 %s230, 1
    %p234 = scmp.eq.s32.totalorder %s15, 3
    %p235 = scmp.ne.s32.totalorder %s230, %s232
    %p236 = scmp.eq.s32.totalorder %s15, 0
    %p237 = por %p235, %p236
    %p238 = scmp.ne.s32.totalorder %s230, %s232
    %p239 = scmp.eq.s32.totalorder %s20, 3
    %p240 = por %p238, %p239
    %p241 = scmp.ne.s32.totalorder %s232, %s233
    %p242 = scmp.eq.s32.totalorder %s20, 0
    %p243 = por %p241, %p242
    %p244 = scmp.ne.s32.totalorder %s232, %s233
    %p245 = scmp.eq.s32.totalorder %s21, 3
    %p246 = por %p244, %p245
    %p248 = scmp.ne.s32.totalorder %s233, %s247
    %p249 = scmp.eq.s32.totalorder %s21, 0
    %p250 = por %p248, %p249
    %s251 = ssub.s32 %s22, %s34
    %p252 = scmp.eq.s32.totalorder %s251, 0
    %s254 = sadd.s32 %s253, 1
    %s255 = scalar_select %p252, %s253, %s254
    %p258 = pneg %p252
    %p259 = scmp.eq.s32.totalorder %s15, 3
    %p260 = por %p258, %p259
    %p261 = scmp.ne.s32.totalorder %s253, %s256
    %p262 = scmp.eq.s32.totalorder %s15, 0
    %p263 = por %p261, %p262
    %p264 = scmp.ne.s32.totalorder %s253, %s256
    %p265 = scmp.eq.s32.totalorder %s20, 3
    %p266 = por %p264, %p265
    %p267 = scmp.ne.s32.totalorder %s256, %s257
    %p268 = scmp.eq.s32.totalorder %s20, 0
    %p269 = por %p267, %p268
    %p270 = scmp.ne.s32.totalorder %s256, %s257
    %p271 = scmp.eq.s32.totalorder %s21, 3
    %p272 = por %p270, %p271
    %p274 = scmp.ne.s32.totalorder %s257, %s273
    %p275 = scmp.eq.s32.totalorder %s21, 0
    %p276 = por %p274, %p275
    %p277 = scmp.le.s32.totalorder 1, %s15
    %p278 = scmp.lt.s32.totalorder %s15, 5
    %p279 = pnand %p277, %p278
    %p280 = pneg %p279
    // Predicated region
    $region9: #{gin_forward.2} parent=5 // pred_check
      _
    $region10: #{gin_forward.2} parent=5 // pred_check_branch
      %282 = sbr.rel (%p279) target = $region12
    $region11: #{gin_forward.2} parent=5 // pred_region
      %s283 = ssub.s32 %s15, 1
      // Predicated region
      $region13: #{gin_forward.2} parent=11 // pred_check
        %p284 = pneg %p48
      $region14: #{gin_forward.2} parent=11 // pred_check_branch
        %286 = sbr.rel (%p284) target = $region16
      $region15: #{gin_forward.2} parent=11 // pred_region
        _
      $region16: #{gin_forward.2} parent=11 // pred_fallthru
        _
      // Predicated region
      $region17: #{gin_forward.2} parent=11 // pred_check
        %p287 = pneg %p159
      $region18: #{gin_forward.2} parent=11 // pred_check_branch
        %289 = sbr.rel (%p287) target = $region20
      $region19: #{gin_forward.2} parent=11 // pred_region
        _
      $region20: #{gin_forward.2} parent=11 // pred_fallthru
        _
      // Predicated region
      $region21: #{gin_forward.2} parent=11 // pred_check
        %p290 = pneg %p180
      $region22: #{gin_forward.2} parent=11 // pred_check_branch
        %292 = sbr.rel (%p290) target = $region24
      $region23: #{gin_forward.2} parent=11 // pred_region
        _
      $region24: #{gin_forward.2} parent=11 // pred_fallthru
        _
      // Predicated region
      $region25: #{gin_forward.2} parent=11 // pred_check
        %p293 = pneg %p201
      $region26: #{gin_forward.2} parent=11 // pred_check_branch
        %295 = sbr.rel (%p293) target = $region28
      $region27: #{gin_forward.2} parent=11 // pred_region
        _
      $region28: #{gin_forward.2} parent=11 // pred_fallthru
        _
      // Predicated region
      $region29: #{gin_forward.2} parent=11 // pred_check
        %p296 = pneg %p222
      $region30: #{gin_forward.2} parent=11 // pred_check_branch
        %298 = sbr.rel (%p296) target = $region32
      $region31: #{gin_forward.2} parent=11 // pred_region
        _
      $region32: #{gin_forward.2} parent=11 // pred_fallthru
        _
      // Predicated region
      $region33: #{gin_forward.2} parent=11 // pred_check
        %p299 = pneg %p243
      $region34: #{gin_forward.2} parent=11 // pred_check_branch
        %301 = sbr.rel (%p299) target = $region36
      $region35: #{gin_forward.2} parent=11 // pred_region
        _
      $region36: #{gin_forward.2} parent=11 // pred_fallthru
        _
    $region12: #{gin_forward.2} parent=5 // pred_fallthru
      _
    %p302 = scmp.lt.s32.totalorder %s15, 4
    // Predicated region
    $region37: #{gin_forward.2} parent=5 // pred_check
      %p303 = pneg %p302
    $region38: #{gin_forward.2} parent=5 // pred_check_branch
      %305 = sbr.rel (%p303) target = $region40
    $region39: #{gin_forward.2} parent=5 // pred_region
      // Predicated region
      $region41: #{gin_forward.2} parent=39 // pred_check
        %p306 = pneg %p72
      $region42: #{gin_forward.2} parent=39 // pred_check_branch
        %308 = sbr.rel (%p306) target = $region44
      $region43: #{gin_forward.2} parent=39 // pred_region
        %s309 = smul.u32 %s22, 2
        %s310 = sadd.s32 %s309, %s23
        %s311 = smul.u32 2, %s310
        %p312 = scmp.lt.s32.totalorder %s311, 7
        %s313 = scalar_select %p312, %s311, 7
        %s314 = smul.addr %s313, 8
        %s315 = scalar_lea.vmem %s1, %s314
        %s316 = smul.u32 %s22, 2
        %s317 = sadd.s32 %s316, %s23
        %s318 = smul.u32 2, %s317
      $region44: #{gin_forward.2} parent=39 // pred_fallthru
        _
      // Predicated region
      $region45: #{gin_forward.2} parent=39 // pred_check
        %p319 = pneg %p102
      $region46: #{gin_forward.2} parent=39 // pred_check_branch
        %321 = sbr.rel (%p319) target = $region48
      $region47: #{gin_forward.2} parent=39 // pred_region
        %s322 = smul.u32 %s22, 2
        %s323 = sadd.s32 %s322, %s23
        %p324 = scmp.lt.s32.totalorder %s323, 3
        %s325 = scalar_select %p324, %s323, 3
        %s326 = scalar_lea.vmem %s2, %s325
        %s327 = smul.u32 %s22, 2
        %s328 = sadd.s32 %s327, %s23
      $region48: #{gin_forward.2} parent=39 // pred_fallthru
        _
      // Predicated region
      $region49: #{gin_forward.2} parent=39 // pred_check
        %p329 = pneg %p132
      $region50: #{gin_forward.2} parent=39 // pred_check_branch
        %331 = sbr.rel (%p329) target = $region52
      $region51: #{gin_forward.2} parent=39 // pred_region
        %s332 = smul.u32 %s22, 2
        %s333 = sadd.s32 %s332, %s23
        %s334 = smul.u32 2, %s333
        %p335 = scmp.lt.s32.totalorder %s334, 7
        %s336 = scalar_select %p335, %s334, 7
        %s337 = smul.addr %s336, 8
        %s338 = scalar_lea.vmem %s3, %s337
        %s339 = smul.u32 %s22, 2
        %s340 = sadd.s32 %s339, %s23
        %s341 = smul.u32 2, %s340
      $region52: #{gin_forward.2} parent=39 // pred_fallthru
        _
    $region40: #{gin_forward.2} parent=5 // pred_fallthru
      _
    %p342 = scmp.le.s32.totalorder 1, %s15
    %p343 = scmp.lt.s32.totalorder %s15, 5
    %p344 = pnand %p342, %p343
    %p345 = pneg %p344
    // Predicated region
    $region53: #{gin_forward.2} parent=5 // pred_check
      _
    $region54: #{gin_forward.2} parent=5 // pred_check_branch
      %347 = sbr.rel (%p344) target = $region56
    $region55: #{gin_forward.2} parent=5 // pred_region
      %s348 = ssub.s32 %s15, 1
      %p349 = pneg %p48
      %p350 = pneg %p45
      %s351 = smul.u32 %s24, 2
      %s352 = sadd.s32 %s351, %s25
      %s353 = smul.u32 2, %s352
      %p354 = scmp.lt.s32.totalorder %s353, 7
      %s355 = scalar_select %p354, %s353, 7
      %s356 = smul.addr %s355, 8
      %s357 = scalar_lea.vmem %s1, %s356
      %p358 = pneg %p78
      %p359 = pneg %p75
      %s360 = smul.u32 %s24, 2
      %s361 = sadd.s32 %s360, %s25
      %p362 = scmp.lt.s32.totalorder %s361, 3
      %s363 = scalar_select %p362, %s361, 3
      %s364 = scalar_lea.vmem %s2, %s363
      %p365 = pneg %p108
      %p366 = pneg %p105
      %s367 = smul.u32 %s24, 2
      %s368 = sadd.s32 %s367, %s25
      %s369 = smul.u32 2, %s368
      %p370 = scmp.lt.s32.totalorder %s369, 7
      %s371 = scalar_select %p370, %s369, 7
      %s372 = smul.addr %s371, 8
      %s373 = scalar_lea.vmem %s3, %s372
      %p374 = pneg %p138
      %p375 = pneg %p135
      %p376 = pneg %p159
      %p377 = pneg %p156
      %p378 = pneg %p180
      %p379 = pneg %p177
      %p380 = pneg %p201
      %p381 = pneg %p198
      %p382 = pneg %p222
      %p383 = pneg %p219
      %p384 = pneg %p243
      %p385 = pneg %p240
      %p386 = pneg %p269
      %p387 = pneg %p266
      %p388 = scmp.lt.s32.totalorder %s24, 1
      %s389 = scalar_select %p388, %s24, 1
      %s390 = smul.addr %s389, 2
      %s391 = smul.addr %s390, 8
      %s392 = scalar_lea.vmem %s9, %s391
      %s393 = smul.u32 %s24, 2
      %s394 = sadd.s32 %s393, %s25
      %s395 = smul.u32 2, %s394
      %p396 = scmp.lt.s32.totalorder %s395, 7
      %s397 = scalar_select %p396, %s395, 7
      %s398 = smul.addr %s397, 8
      %s399 = scalar_lea.vmem %s1, %s398
      %s400 = smul.u32 %s24, 2
      %s401 = sadd.s32 %s400, %s25
      %s402 = smul.u32 2, %s401
      %s403 = smul.u32 %s24, 2
      %s404 = sadd.s32 %s403, %s25
      %p405 = scmp.lt.s32.totalorder %s404, 3
      %s406 = scalar_select %p405, %s404, 3
      %s407 = scalar_lea.vmem %s2, %s406
      %s408 = smul.u32 %s24, 2
      %s409 = sadd.s32 %s408, %s25
      %s410 = smul.u32 %s24, 2
      %s411 = sadd.s32 %s410, %s25
      %s412 = smul.u32 2, %s411
      %p413 = scmp.lt.s32.totalorder %s412, 7
      %s414 = scalar_select %p413, %s412, 7
      %s415 = smul.addr %s414, 8
      %s416 = scalar_lea.vmem %s3, %s415
      %s417 = smul.u32 %s24, 2
      %s418 = sadd.s32 %s417, %s25
      %s419 = smul.u32 2, %s418
      %p420 = scmp.lt.s32.totalorder %s24, 1
      %s421 = scalar_select %p420, %s24, 1
      %s422 = smul.addr %s421, 2
      %s423 = smul.addr %s422, 8
      %s424 = scalar_lea.vmem %s9, %s423
      %p425 = scmp.eq.s32.totalorder %s25, 0
      // Predicated region
      $region57: #{gin_forward.2} parent=55 // pred_check
        %p426 = pneg %p425
      $region58: #{gin_forward.2} parent=55 // pred_check_branch
        %428 = sbr.rel (%p426) target = $region60
      $region59: #{gin_forward.2} parent=55 // pred_region
        %v429 = vld [vmem:[%s0] sm:$0xff]
        %v430 = vld [vmem:[%s0 + $0x8] sm:$0xff]
        %v431 = vld [vmem:[%s4] sm:$0xff]
        %v432 = vld [vmem:[%s4 + $0x8] sm:$0xff]
        %v433 = vld [vmem:[%s4 + $0x10] sm:$0xff]
        %v434 = vld [vmem:[%s4 + $0x18] sm:$0xff]
        %vm435 = vcmask 261120
        %v437 = vsel %vm435, %v429, 0
        %v440 = vsel %vm435, %v430, 0
        %442 = vmatprep.subr.mxu0 0.0
        %443 = vmatpush1.msra.mxu0 %v431
        %444 = vmatprep.subr.mxu0 0.0
        %445 = vmatpush1.msra.mxu0 %v432
        %446 = vmatprep.subr.mxu0 0.0
        %447 = vmatpush1.msra.mxu0 %v433
        %448 = vmatprep.subr.mxu0 0.0
        %449 = vmatpush1.msra.mxu0 %v434
        %450 = vmatprep.subr.mxu0 0.0
        %451 = vmatpush1.msra.mxu0 0.0
        %452 = vmatprep.subr.mxu0 0.0
        %453 = vmatpush1.msra.mxu0 0.0
        %454 = vmatprep.subr.mxu0 0.0
        %455 = vmatpush1.msra.mxu0 0.0
        %456 = vmatprep.subr.mxu0 0.0
        %457 = vmatpush1.msra.mxu0 0.0
        %458 = vmatprep.subr.mxu0 0.0
        %459 = vmatpush1.msra.mxu0 0.0
        %460 = vmatprep.subr.mxu0 0.0
        %461 = vmatpush1.msra.mxu0 0.0
        %462 = vmatprep.subr.mxu0 0.0
        %463 = vmatpush1.msra.mxu0 0.0
        %464 = vmatprep.subr.mxu0 0.0
        %465 = vmatpush1.msra.mxu0 0.0
        %466 = vmatprep.subr.mxu0 0.0
        %467 = vmatpush1.msra.mxu0 0.0
        %468 = vmatprep.subr.mxu0 0.0
        %469 = vmatpush1.msra.mxu0 0.0
        %470 = vmatprep.subr.mxu0 0.0
        %471 = vmatpush1.msra.mxu0 0.0
        %472 = vmatprep.subr.mxu0 0.0
        %473 = vmatpush1.msra.mxu0 0.0
        %474 = vmatprep.subr.mxu0 0.0
        %475 = vmatpush1.msra.mxu0 0.0
        %476 = vmatprep.subr.mxu0 0.0
        %477 = vmatpush1.msra.mxu0 0.0
        %478 = vmatprep.subr.mxu0 0.0
        %479 = vmatpush1.msra.mxu0 0.0
        %480 = vmatprep.subr.mxu0 0.0
        %481 = vmatpush1.msra.mxu0 0.0
        %482 = vmatprep.subr.mxu0 0.0
        %483 = vmatpush1.msra.mxu0 0.0
        %484 = vmatprep.subr.mxu0 0.0
        %485 = vmatpush1.msra.mxu0 0.0
        %486 = vmatprep.subr.mxu0 0.0
        %487 = vmatpush1.msra.mxu0 0.0
        %488 = vmatprep.subr.mxu0 0.0
        %489 = vmatpush1.msra.mxu0 0.0
        %490 = vmatprep.subr.mxu0 0.0
        %491 = vmatpush1.msra.mxu0 0.0
        %492 = vmatprep.subr.mxu0 0.0
        %493 = vmatpush1.msra.mxu0 0.0
        %494 = vmatprep.subr.mxu0 0.0
        %495 = vmatpush1.msra.mxu0 0.0
        %496 = vmatprep.subr.mxu0 0.0
        %497 = vmatpush1.msra.mxu0 0.0
        %498 = vmatprep.subr.mxu0 0.0
        %499 = vmatpush1.msra.mxu0 0.0
        %500 = vmatprep.subr.mxu0 0.0
        %501 = vmatpush1.msra.mxu0 0.0
        %502 = vmatprep.subr.mxu0 0.0
        %503 = vmatpush1.msra.mxu0 0.0
        %504 = vmatprep.subr.mxu0 0.0
        %505 = vmatpush1.msra.mxu0 0.0
        %506 = vmatprep.mubr.f32.mxu0 0.0
        %507 = vmatmul.mubr.f32.gmra.mrb[0].mxu0 %v437
        %v508 = vpop.f32.mrb[0].mxu0
        %v509 = vadd.f32 0.0, %v508
        %v510 = vpop.f32.mrb[0].mxu0
        %511 = vmatprep.mubr.f32.mxu0 0.0
        %512 = vmatmul.mubr.f32.gmra.mrb[0].mxu0 %v440
        %v513 = vpop.f32.mrb[0].mxu0
        %v514 = vadd.f32 0.0, %v513
        %v515 = vpop.f32.mrb[0].mxu0
        %516 = vdwg.mxu0
        %517 = vst.msk [vmem:[#allocation2] sm:$0xff] %vm435, %v509
        %518 = vst.msk [vmem:[#allocation2 + $0x8] sm:$0xff] %vm435, %v514
        %v519 = vlaneseq
        %v520 = vand.u32 %v519, 127
        %vm521 = vcmask 130048
        %522 = vst.msk [vmem:[#allocation3] sm:$0xff] %vm521, %v520
        %523 = vst.msk [vmem:[#allocation3 + $0x8] sm:$0xff] %vm521, %v520
        %v524 = vlaneseq
        %v525 = vshrl.u32 %v524, 7
        %v526 = vadd.s32 %v525, 8
        %527 = vst.msk [vmem:[#allocation4] sm:$0xff] %vm521, %v525
        %528 = vst.msk [vmem:[#allocation4 + $0x8] sm:$0xff] %vm521, %v526
        %529 = vst.msk [vmem:[%s424] sm:$0xff] %vm435, 0.0
        %530 = vst.msk [vmem:[%s424 + $0x8] sm:$0xff] %vm435, 0.0
      $region60: #{gin_forward.2} parent=55 // pred_fallthru
        _
      %v531 = vld [vmem:[#allocation3] sm:$0xff]
      %v532 = vld [vmem:[#allocation3 + $0x8] sm:$0xff]
      %v533 = vld [vmem:[%s399] sm:$0xff]
      %v534 = vld [vmem:[%s399 + $0x8] sm:$0xff]
      %535 = vset.pattern.permute.xlu0 0
      %536 = vperm.xlu0 %535, %v533
      %v537 = vpop.permute.xlu0 %536
      %538 = vset.pattern.permute.xlu0 0
      %539 = vperm.xlu0 %538, %v534
      %v540 = vpop.permute.xlu0 %539
      %vm541 = vcmp.eq.s32.totalorder %v531, %v537
      %vm542 = vcmp.eq.s32.totalorder %v532, %v540
      %v543 = vsel %vm541, 1, 0
      %v544 = vsel %vm542, 1, 0
      %v545 = vcvt.s32.f32 %v543
      %v546 = vcvt.s32.f32 %v544
      %v547 = vld [vmem:[#allocation2] sm:$0xff]
      %v548 = vld [vmem:[#allocation2 + $0x8] sm:$0xff]
      %v549 = vld [vmem:[%s416] sm:$0xff]
      %v550 = vld [vmem:[%s416 + $0x8] sm:$0xff]
      %v551 = vld [vmem:[%s5] sm:$0xff]
      %v552 = vld [vmem:[%s5 + $0x8] sm:$0xff]
      %v553 = vld [vmem:[%s5 + $0x10] sm:$0xff]
      %v554 = vld [vmem:[%s5 + $0x18] sm:$0xff]
      %vm555 = vcmask 261120
      %v557 = vsel %vm555, %v549, 0
      %v560 = vsel %vm555, %v550, 0
      %562 = vmatprep.subr.mxu0 0.0
      %563 = vmatpush1.msra.mxu0 %v551
      %564 = vmatprep.subr.mxu0 0.0
      %565 = vmatpush1.msra.mxu0 %v552
      %566 = vmatprep.subr.mxu0 0.0
      %567 = vmatpush1.msra.mxu0 %v553
      %568 = vmatprep.subr.mxu0 0.0
      %569 = vmatpush1.msra.mxu0 %v554
      %570 = vmatprep.subr.mxu0 0.0
      %571 = vmatpush1.msra.mxu0 0.0
      %572 = vmatprep.subr.mxu0 0.0
      %573 = vmatpush1.msra.mxu0 0.0
      %574 = vmatprep.subr.mxu0 0.0
      %575 = vmatpush1.msra.mxu0 0.0
      %576 = vmatprep.subr.mxu0 0.0
      %577 = vmatpush1.msra.mxu0 0.0
      %578 = vmatprep.subr.mxu0 0.0
      %579 = vmatpush1.msra.mxu0 0.0
      %580 = vmatprep.subr.mxu0 0.0
      %581 = vmatpush1.msra.mxu0 0.0
      %582 = vmatprep.subr.mxu0 0.0
      %583 = vmatpush1.msra.mxu0 0.0
      %584 = vmatprep.subr.mxu0 0.0
      %585 = vmatpush1.msra.mxu0 0.0
      %586 = vmatprep.subr.mxu0 0.0
      %587 = vmatpush1.msra.mxu0 0.0
      %588 = vmatprep.subr.mxu0 0.0
      %589 = vmatpush1.msra.mxu0 0.0
      %590 = vmatprep.subr.mxu0 0.0
      %591 = vmatpush1.msra.mxu0 0.0
      %592 = vmatprep.subr.mxu0 0.0
      %593 = vmatpush1.msra.mxu0 0.0
      %594 = vmatprep.subr.mxu0 0.0
      %595 = vmatpush1.msra.mxu0 0.0
      %596 = vmatprep.subr.mxu0 0.0
      %597 = vmatpush1.msra.mxu0 0.0
      %598 = vmatprep.subr.mxu0 0.0
      %599 = vmatpush1.msra.mxu0 0.0
      %600 = vmatprep.subr.mxu0 0.0
      %601 = vmatpush1.msra.mxu0 0.0
      %602 = vmatprep.subr.mxu0 0.0
      %603 = vmatpush1.msra.mxu0 0.0
      %604 = vmatprep.subr.mxu0 0.0
      %605 = vmatpush1.msra.mxu0 0.0
      %606 = vmatprep.subr.mxu0 0.0
      %607 = vmatpush1.msra.mxu0 0.0
      %608 = vmatprep.subr.mxu0 0.0
      %609 = vmatpush1.msra.mxu0 0.0
      %610 = vmatprep.subr.mxu0 0.0
      %611 = vmatpush1.msra.mxu0 0.0
      %612 = vmatprep.subr.mxu0 0.0
      %613 = vmatpush1.msra.mxu0 0.0
      %614 = vmatprep.subr.mxu0 0.0
      %615 = vmatpush1.msra.mxu0 0.0
      %616 = vmatprep.subr.mxu0 0.0
      %617 = vmatpush1.msra.mxu0 0.0
      %618 = vmatprep.subr.mxu0 0.0
      %619 = vmatpush1.msra.mxu0 0.0
      %620 = vmatprep.subr.mxu0 0.0
      %621 = vmatpush1.msra.mxu0 0.0
      %622 = vmatprep.subr.mxu0 0.0
      %623 = vmatpush1.msra.mxu0 0.0
      %624 = vmatprep.subr.mxu0 0.0
      %625 = vmatpush1.msra.mxu0 0.0
      %626 = vmatprep.mubr.f32.mxu0 0.0
      %627 = vmatmul.mubr.f32.gmra.mrb[0].mxu0 %v557
      %v628 = vpop.f32.mrb[0].mxu0
      %v629 = vadd.f32 0.0, %v628
      %v630 = vpop.f32.mrb[0].mxu0
      %631 = vmatprep.mubr.f32.mxu0 0.0
      %632 = vmatmul.mubr.f32.gmra.mrb[0].mxu0 %v560
      %v633 = vpop.f32.mrb[0].mxu0
      %v634 = vadd.f32 0.0, %v633
      %v635 = vpop.f32.mrb[0].mxu0
      %636 = vdwg.mxu0
      %vm637 = vcmask 130048
      %v639 = vsel %vm637, %v545, 0
      %v642 = vsel %vm637, %v546, 0
      %644 = vmatprep.subr.mxu0 0.0
      %645 = vmatpush1.msra.mxu0 %v547
      %646 = vmatprep.subr.mxu0 0.0
      %647 = vmatpush1.msra.mxu0 %v548
      %648 = vmatprep.subr.mxu0 0.0
      %649 = vmatpush1.msra.mxu0 0.0
      %650 = vmatprep.subr.mxu0 0.0
      %651 = vmatpush1.msra.mxu0 0.0
      %652 = vmatprep.subr.mxu0 0.0
      %653 = vmatpush1.msra.mxu0 0.0
      %654 = vmatprep.subr.mxu0 0.0
      %655 = vmatpush1.msra.mxu0 0.0
      %656 = vmatprep.subr.mxu0 0.0
      %657 = vmatpush1.msra.mxu0 0.0
      %658 = vmatprep.subr.mxu0 0.0
      %659 = vmatpush1.msra.mxu0 0.0
      %660 = vmatprep.subr.mxu0 0.0
      %661 = vmatpush1.msra.mxu0 0.0
      %662 = vmatprep.subr.mxu0 0.0
      %663 = vmatpush1.msra.mxu0 0.0
      %664 = vmatprep.subr.mxu0 0.0
      %665 = vmatpush1.msra.mxu0 0.0
      %666 = vmatprep.subr.mxu0 0.0
      %667 = vmatpush1.msra.mxu0 0.0
      %668 = vmatprep.subr.mxu0 0.0
      %669 = vmatpush1.msra.mxu0 0.0
      %670 = vmatprep.subr.mxu0 0.0
      %671 = vmatpush1.msra.mxu0 0.0
      %672 = vmatprep.subr.mxu0 0.0
      %673 = vmatpush1.msra.mxu0 0.0
      %674 = vmatprep.subr.mxu0 0.0
      %675 = vmatpush1.msra.mxu0 0.0
      %676 = vmatprep.subr.mxu0 0.0
      %677 = vmatpush1.msra.mxu0 0.0
      %678 = vmatprep.subr.mxu0 0.0
      %679 = vmatpush1.msra.mxu0 0.0
      %680 = vmatprep.subr.mxu0 0.0
      %681 = vmatpush1.msra.mxu0 0.0
      %682 = vmatprep.subr.mxu0 0.0
      %683 = vmatpush1.msra.mxu0 0.0
      %684 = vmatprep.subr.mxu0 0.0
      %685 = vmatpush1.msra.mxu0 0.0
      %686 = vmatprep.subr.mxu0 0.0
      %687 = vmatpush1.msra.mxu0 0.0
      %688 = vmatprep.subr.mxu0 0.0
      %689 = vmatpush1.msra.mxu0 0.0
      %690 = vmatprep.subr.mxu0 0.0
      %691 = vmatpush1.msra.mxu0 0.0
      %692 = vmatprep.subr.mxu0 0.0
      %693 = vmatpush1.msra.mxu0 0.0
      %694 = vmatprep.subr.mxu0 0.0
      %695 = vmatpush1.msra.mxu0 0.0
      %696 = vmatprep.subr.mxu0 0.0
      %697 = vmatpush1.msra.mxu0 0.0
      %698 = vmatprep.subr.mxu0 0.0
      %699 = vmatpush1.msra.mxu0 0.0
      %700 = vmatprep.subr.mxu0 0.0
      %701 = vmatpush1.msra.mxu0 0.0
      %702 = vmatprep.subr.mxu0 0.0
      %703 = vmatpush1.msra.mxu0 0.0
      %704 = vmatprep.subr.mxu0 0.0
      %705 = vmatpush1.msra.mxu0 0.0
      %706 = vmatprep.subr.mxu0 0.0
      %707 = vmatpush1.msra.mxu0 0.0
      %708 = vmatprep.mubr.f32.mxu0 0.0
      %709 = vmatmul.mubr.f32.gmra.mrb[0].mxu0 %v639
      %v710 = vpop.f32.mrb[0].mxu0
      %v711 = vadd.f32 %v629, %v710
      %v712 = vpop.f32.mrb[0].mxu0
      %713 = vmatprep.mubr.f32.mxu0 0.0
      %714 = vmatmul.mubr.f32.gmra.mrb[0].mxu0 %v642
      %v715 = vpop.f32.mrb[0].mxu0
      %v716 = vadd.f32 %v634, %v715
      %v717 = vpop.f32.mrb[0].mxu0
      %718 = vdwg.mxu0
      %v719 = vld [vmem:[%s6] sm:$0x1]
      %v721 = vlaneseq
      %v722 = vshrl.u32 %v721, 7
      %v723 = vsub.s32 0, %v722
      %v724 = vrot.slane %v719, %v723
      %v726 = vadd.f32 %v711, %v724
      %v727 = vadd.f32 %v716, %v724
      %v728 = vld [vmem:[%s7] sm:$0x1]
      %v729 = vld [vmem:[%s8] sm:$0x1]
      %v730 = vsel %vm555, %v726, 0.0
      %731 = vadd.xlane.f32.xlu0 %v730
      %v732 = vpop.xlane.xlu0 %731
      %v733 = vsel %vm555, %v727, 0.0
      %734 = vadd.xlane.f32.xlu0 %v733
      %v735 = vpop.xlane.xlu0 %734
      %v736 = vrcp.pop 32.0
      %v737 = vmul.f32 %v732, %v736
      %v738 = vmul.f32 %v735, %v736
      %v739 = vsub.f32 %v726, %v737
      %v740 = vsub.f32 %v727, %v738
      %v741 = vmul.f32 %v739, %v739
      %v742 = vmul.f32 %v740, %v740
      %v743 = vsel %vm555, %v741, 0.0
      %744 = vadd.xlane.f32.xlu0 %v743
      %v745 = vpop.xlane.xlu0 %744
      %v746 = vsel %vm555, %v742, 0.0
      %747 = vadd.xlane.f32.xlu0 %v746
      %v748 = vpop.xlane.xlu0 %747
      %v749 = vmul.f32 %v745, %v736
      %v750 = vmul.f32 %v748, %v736
      %v751 = vadd.f32 %v749, 1e-05
      %v752 = vadd.f32 %v750, 1e-05
      %v753 = vrsqrt.pop %v751
      %v754 = vrsqrt.pop %v752
      %v755 = vmul.f32 %v739, %v753
      %v756 = vmul.f32 %v740, %v754
      %v758 = vlaneseq
      %v759 = vshrl.u32 %v758, 7
      %v760 = vsub.s32 0, %v759
      %v761 = vrot.slane %v728, %v760
      %v763 = vmul.f32 %v755, %v761
      %v764 = vmul.f32 %v756, %v761
      %v766 = vlaneseq
      %v767 = vshrl.u32 %v766, 7
      %v768 = vsub.s32 0, %v767
      %v769 = vrot.slane %v729, %v768
      %v771 = vadd.f32 %v763, %v769
      %v772 = vadd.f32 %v764, %v769
      %v773 = vmax.f32 %v771, 0.0
      %v774 = vmax.f32 %v772, 0.0
      %v775 = vld [vmem:[#allocation4] sm:$0xff]
      %v776 = vld [vmem:[#allocation4 + $0x8] sm:$0xff]
      %v777 = vld [vmem:[%s407] sm:$0x1]
      %v778 = vlaneseq
      %v779 = vshrl.u32 %v778, 7
      %v780 = vsub.s32 0, %v779
      %v781 = vrot.slane %v777, %v780
      %vm782 = vcmp.eq.s32.totalorder %v775, %v781
      %vm783 = vcmp.eq.s32.totalorder %v776, %v781
      %v784 = vsel %vm782, 1, 0
      %v785 = vsel %vm783, 1, 0
      %v786 = vcvt.s32.f32 %v784
      %v787 = vcvt.s32.f32 %v785
      %v788 = vld [vmem:[%s424] sm:$0xff]
      %v789 = vld [vmem:[%s424 + $0x8] sm:$0xff]
      %v791 = vsel %vm637, %v786, 0
      %v794 = vsel %vm637, %v787, 0
      %796 = vmatprep.subr.mxu0 0.0
      %797 = vmatpush1.msra.mxu0 %v773
      %798 = vmatprep.subr.mxu0 0.0
      %799 = vmatpush1.msra.mxu0 %v774
      %800 = vmatprep.subr.mxu0 0.0
      %801 = vmatpush1.msra.mxu0 0.0
      %802 = vmatprep.subr.mxu0 0.0
      %803 = vmatpush1.msra.mxu0 0.0
      %804 = vmatprep.subr.mxu0 0.0
      %805 = vmatpush1.msra.mxu0 0.0
      %806 = vmatprep.subr.mxu0 0.0
      %807 = vmatpush1.msra.mxu0 0.0
      %808 = vmatprep.subr.mxu0 0.0
      %809 = vmatpush1.msra.mxu0 0.0
      %810 = vmatprep.subr.mxu0 0.0
      %811 = vmatpush1.msra.mxu0 0.0
      %812 = vmatprep.subr.mxu0 0.0
      %813 = vmatpush1.msra.mxu0 0.0
      %814 = vmatprep.subr.mxu0 0.0
      %815 = vmatpush1.msra.mxu0 0.0
      %816 = vmatprep.subr.mxu0 0.0
      %817 = vmatpush1.msra.mxu0 0.0
      %818 = vmatprep.subr.mxu0 0.0
      %819 = vmatpush1.msra.mxu0 0.0
      %820 = vmatprep.subr.mxu0 0.0
      %821 = vmatpush1.msra.mxu0 0.0
      %822 = vmatprep.subr.mxu0 0.0
      %823 = vmatpush1.msra.mxu0 0.0
      %824 = vmatprep.subr.mxu0 0.0
      %825 = vmatpush1.msra.mxu0 0.0
      %826 = vmatprep.subr.mxu0 0.0
      %827 = vmatpush1.msra.mxu0 0.0
      %828 = vmatprep.subr.mxu0 0.0
      %829 = vmatpush1.msra.mxu0 0.0
      %830 = vmatprep.subr.mxu0 0.0
      %831 = vmatpush1.msra.mxu0 0.0
      %832 = vmatprep.subr.mxu0 0.0
      %833 = vmatpush1.msra.mxu0 0.0
      %834 = vmatprep.subr.mxu0 0.0
      %835 = vmatpush1.msra.mxu0 0.0
      %836 = vmatprep.subr.mxu0 0.0
      %837 = vmatpush1.msra.mxu0 0.0
      %838 = vmatprep.subr.mxu0 0.0
      %839 = vmatpush1.msra.mxu0 0.0
      %840 = vmatprep.subr.mxu0 0.0
      %841 = vmatpush1.msra.mxu0 0.0
      %842 = vmatprep.subr.mxu0 0.0
      %843 = vmatpush1.msra.mxu0 0.0
      %844 = vmatprep.subr.mxu0 0.0
      %845 = vmatpush1.msra.mxu0 0.0
      %846 = vmatprep.subr.mxu0 0.0
      %847 = vmatpush1.msra.mxu0 0.0
      %848 = vmatprep.subr.mxu0 0.0
      %849 = vmatpush1.msra.mxu0 0.0
      %850 = vmatprep.subr.mxu0 0.0
      %851 = vmatpush1.msra.mxu0 0.0
      %852 = vmatprep.subr.mxu0 0.0
      %853 = vmatpush1.msra.mxu0 0.0
      %854 = vmatprep.subr.mxu0 0.0
      %855 = vmatpush1.msra.mxu0 0.0
      %856 = vmatprep.subr.mxu0 0.0
      %857 = vmatpush1.msra.mxu0 0.0
      %858 = vmatprep.subr.mxu0 0.0
      %859 = vmatpush1.msra.mxu0 0.0
      %860 = vmatprep.mubr.f32.mxu0 0.0
      %861 = vmatmul.mubr.f32.gmra.mrb[0].mxu0 %v791
      %v862 = vpop.f32.mrb[0].mxu0
      %v863 = vadd.f32 0.0, %v862
      %v864 = vpop.f32.mrb[0].mxu0
      %865 = vmatprep.mubr.f32.mxu0 0.0
      %866 = vmatmul.mubr.f32.gmra.mrb[0].mxu0 %v794
      %v867 = vpop.f32.mrb[0].mxu0
      %v868 = vadd.f32 0.0, %v867
      %v869 = vpop.f32.mrb[0].mxu0
      %870 = vdwg.mxu0
      %v871 = vadd.f32 %v788, %v863
      %v872 = vadd.f32 %v789, %v868
      %873 = vst.msk [vmem:[%s424] sm:$0xff] %vm555, %v871
      %874 = vst.msk [vmem:[%s424 + $0x8] sm:$0xff] %vm555, %v872
      %p875 = scmp.lt.s32.totalorder %s24, 1
      %s876 = scalar_select %p875, %s24, 1
      %s877 = smul.addr %s876, 2
      %s878 = smul.addr %s877, 8
      %s879 = scalar_lea.vmem %s9, %s878
      // Predicated region
      $region61: #{gin_forward.2} parent=55 // pred_check
        %p880 = pneg %p266
      $region62: #{gin_forward.2} parent=55 // pred_check_branch
        %882 = sbr.rel (%p880) target = $region64
      $region63: #{gin_forward.2} parent=55 // pred_region
        _
      $region64: #{gin_forward.2} parent=55 // pred_fallthru
        _
    $region56: #{gin_forward.2} parent=5 // pred_fallthru
      _
    %p883 = scmp.le.s32.totalorder 2, %s15
    // Predicated region
    $region65: #{gin_forward.2} parent=5 // pred_check
      %p884 = pneg %p883
    $region66: #{gin_forward.2} parent=5 // pred_check_branch
      %886 = sbr.rel (%p884) target = $region68
    $region67: #{gin_forward.2} parent=5 // pred_region
      %s887 = ssub.s32 %s15, 2
      // Predicated region
      $region69: #{gin_forward.2} parent=67 // pred_check
        %p888 = pneg %p272
      $region70: #{gin_forward.2} parent=67 // pred_check_branch
        %890 = sbr.rel (%p888) target = $region72
      $region71: #{gin_forward.2} parent=67 // pred_region
        %p891 = scmp.lt.s32.totalorder %s26, 1
        %s892 = scalar_select %p891, %s26, 1
        %s893 = smul.addr %s892, 2
        %s894 = smul.addr %s893, 8
        %s895 = scalar_lea.vmem %s9, %s894
      $region72: #{gin_forward.2} parent=67 // pred_fallthru
        _
    $region68: #{gin_forward.2} parent=5 // pred_fallthru
      _
  $region6: #{gin_forward.2} parent=0 // loop_footer
    %s19 = sadd.s32 1, %s15
  $region7: #{gin_forward.2} parent=0 // loop_footer_branch
    %14 = sbr.rel target = $region3
  $region8: #{gin_forward.2} parent=0 // loop_exit
    _

// kernel: gin_forward.3
$region0: #{gin_forward.3}
  #allocation0 [shape = 'u32[]', space=smem, size = 0x4, offset = 0x4, fixed_abs, tag = 'smem constant byte address 0x4 - core index']
  #allocation1 [shape = 'u32[144,128]{1,0:T(1,128)}', space=vmem, size = 0x12000, scoped, tag = 'internal scratch']
  #allocation2 [shape = 'f32[1]{0:T(128)S(6)}', space=smem, size = 0x200, scoped, tag = 'scoped memory for gin_forward.3']
  %s0 = inlined_call_operand.vmem [shape: f32[16,32], index: 0, kind: input, shape index: {}]
  %s1 = inlined_call_operand.vmem [shape: f32[2,16,32], index: 1, kind: input, shape index: {}]
  %s2 = inlined_call_operand.<no memory space> [shape: f32[1], index: 2, kind: input, shape index: {}]
  %s3 = inlined_call_operand.vmem [shape: f32[32,32], index: 3, kind: input, shape index: {}]
  %s4 = inlined_call_operand.vmem [shape: f32[1,32], index: 4, kind: input, shape index: {}]
  %s5 = inlined_call_operand.vmem [shape: f32[1,32], index: 5, kind: input, shape index: {}]
  %s6 = inlined_call_operand.vmem [shape: f32[1,32], index: 6, kind: input, shape index: {}]
  %s7 = inlined_call_operand.vmem [shape: f32[32,128], index: 7, kind: input, shape index: {}]
  %s8 = inlined_call_operand.vmem [shape: f32[32,128], index: 8, kind: input, shape index: {}]
  %s9 = inlined_call_operand.vmem [shape: f32[1,128], index: 9, kind: input, shape index: {}]
  %s10 = inlined_call_operand.hbm [shape: f32[16,128], index: 10, kind: output, shape index: {}]
  %s11 = sld [smem:[#allocation0]]
  $region111: #{gin_forward.3} parent=0
    _
  %s13 = ssub.s32 1, %s11
  %s14 = scalar_select 0, %s13, %s11
  %15 = sst [smem:[#allocation2]] %s2
  $region1: #{gin_forward.3} parent=0
    #allocation3 [shape = 'u8[16384]{0}', space=vmem, size = 0x4000, scoped, tag = 'input window, operand 1']
    #allocation4 [shape = 'u8[8192]{0}', space=vmem, size = 0x2000, scoped, tag = 'output window, operand 0']
    #allocation5 [shape = 's32[2]{0}', space=sflag, size = 0x8, scoped, tag = 'scoped memory for gin_forward.3']
    %16 = vsyncpa [#allocation5], 0
    %s17 = scalar_lea.sflag [#allocation5], 1
    %18 = vsyncpa %s17, 0
    loop: start=0, step=1, limit=4
    $region2: #{gin_forward.3} parent=1 // loop_pre_header
      _
    $region3: #{gin_forward.3} parent=1 // loop_header
      %s20 = sphi 0, %s24
      %p21 = scmp.ge.s32.totalorder %s20, 4
      %s30 = sphi 0, %s32
      %s33 = sphi 0, %s30
      %s34 = sphi 0, %s33
      %s50 = sphi 0, %s34
      %s56 = sphi 0, %s58
      %s59 = sphi 0, %s56
      %s60 = sphi 0, %s59
      %s76 = sphi 0, %s60
      %s80 = sphi 0, %s80
      %s82 = sphi 0, %s80
      %s83 = sphi 0, %s82
      %s97 = sphi 0, %s83
      %s101 = sphi 0, %s101
      %s103 = sphi 0, %s101
      %s104 = sphi 0, %s103
      %s118 = sphi 0, %s104
      %s122 = sphi 0, %s122
      %s124 = sphi 0, %s122
      %s125 = sphi 0, %s124
      %s139 = sphi 0, %s125
      %s143 = sphi 0, %s143
      %s145 = sphi 0, %s143
      %s146 = sphi 0, %s145
      %s160 = sphi 0, %s146
      %s164 = sphi 0, %s164
      %s166 = sphi 0, %s164
      %s167 = sphi 0, %s166
      %s181 = sphi 0, %s167
      %s185 = sphi 0, %s185
      %s187 = sphi 0, %s185
      %s188 = sphi 0, %s187
      %s202 = sphi 0, %s188
      %s206 = sphi 0, %s206
      %s208 = sphi 0, %s206
      %s209 = sphi 0, %s208
      %s223 = sphi 0, %s209
      %s227 = sphi 0, %s227
      %s229 = sphi 0, %s227
      %s230 = sphi 0, %s229
      %s244 = sphi 0, %s230
      %s250 = sphi 0, %s252
      %s253 = sphi 0, %s250
      %s254 = sphi 0, %s253
      %s270 = sphi 0, %s254
    $region4: #{gin_forward.3} parent=1 // loop_header_branch
      %23 = sbr.rel (%p21) target = $region8
    $region5: #{gin_forward.3} parent=1 // loop_body
      %s25 = ssub.s32 %s20, 1
      %s26 = ssub.s32 %s20, 2
      %s27 = sadd.s32 %s20, 1
      %s28 = ssub.s32 %s20, %s27
      %p29 = scmp.eq.s32.totalorder %s28, 0
      %s31 = sadd.s32 %s30, 1
      %s32 = scalar_select %p29, %s30, %s31
      %p35 = pneg %p29
      %p36 = scmp.eq.s32.totalorder %s20, 1
      %p37 = por %p35, %p36
      %p38 = scmp.ne.s32.totalorder %s30, %s33
      %p39 = scmp.eq.s32.totalorder %s20, 0
      %p40 = por %p38, %p39
      %p41 = scmp.ne.s32.totalorder %s30, %s33
      %p42 = scmp.eq.s32.totalorder %s25, 1
      %p43 = por %p41, %p42
      %p44 = scmp.ne.s32.totalorder %s33, %s34
      %p45 = scmp.eq.s32.totalorder %s25, 0
      %p46 = por %p44, %p45
      %p47 = scmp.ne.s32.totalorder %s33, %s34
      %p48 = scmp.eq.s32.totalorder %s26, 1
      %p49 = por %p47, %p48
      %p51 = scmp.ne.s32.totalorder %s34, %s50
      %p52 = scmp.eq.s32.totalorder %s26, 0
      %p53 = por %p51, %p52
      %s54 = ssub.s32 %s20, %s27
      %p55 = scmp.eq.s32.totalorder %s54, 0
      %s57 = sadd.s32 %s56, 1
      %s58 = scalar_select %p55, %s56, %s57
      %p61 = pneg %p55
      %p62 = scmp.eq.s32.totalorder %s20, 1
      %p63 = por %p61, %p62
      %p64 = scmp.ne.s32.totalorder %s56, %s59
      %p65 = scmp.eq.s32.totalorder %s20, 0
      %p66 = por %p64, %p65
      %p67 = scmp.ne.s32.totalorder %s56, %s59
      %p68 = scmp.eq.s32.totalorder %s25, 1
      %p69 = por %p67, %p68
      %p70 = scmp.ne.s32.totalorder %s59, %s60
      %p71 = scmp.eq.s32.totalorder %s25, 0
      %p72 = por %p70, %p71
      %p73 = scmp.ne.s32.totalorder %s59, %s60
      %p74 = scmp.eq.s32.totalorder %s26, 1
      %p75 = por %p73, %p74
      %p77 = scmp.ne.s32.totalorder %s60, %s76
      %p78 = scmp.eq.s32.totalorder %s26, 0
      %p79 = por %p77, %p78
      %s81 = sadd.s32 %s80, 1
      %p84 = scmp.eq.s32.totalorder %s20, 1
      %p85 = scmp.ne.s32.totalorder %s80, %s82
      %p86 = scmp.eq.s32.totalorder %s20, 0
      %p87 = por %p85, %p86
      %p88 = scmp.ne.s32.totalorder %s80, %s82
      %p89 = scmp.eq.s32.totalorder %s25, 1
      %p90 = por %p88, %p89
      %p91 = scmp.ne.s32.totalorder %s82, %s83
      %p92 = scmp.eq.s32.totalorder %s25, 0
      %p93 = por %p91, %p92
      %p94 = scmp.ne.s32.totalorder %s82, %s83
      %p95 = scmp.eq.s32.totalorder %s26, 1
      %p96 = por %p94, %p95
      %p98 = scmp.ne.s32.totalorder %s83, %s97
      %p99 = scmp.eq.s32.totalorder %s26, 0
      %p100 = por %p98, %p99
      %s102 = sadd.s32 %s101, 1
      %p105 = scmp.eq.s32.totalorder %s20, 1
      %p106 = scmp.ne.s32.totalorder %s101, %s103
      %p107 = scmp.eq.s32.totalorder %s20, 0
      %p108 = por %p106, %p107
      %p109 = scmp.ne.s32.totalorder %s101, %s103
      %p110 = scmp.eq.s32.totalorder %s25, 1
      %p111 = por %p109, %p110
      %p112 = scmp.ne.s32.totalorder %s103, %s104
      %p113 = scmp.eq.s32.totalorder %s25, 0
      %p114 = por %p112, %p113
      %p115 = scmp.ne.s32.totalorder %s103, %s104
      %p116 = scmp.eq.s32.totalorder %s26, 1
      %p117 = por %p115, %p116
      %p119 = scmp.ne.s32.totalorder %s104, %s118
      %p120 = scmp.eq.s32.totalorder %s26, 0
      %p121 = por %p119, %p120
      %s123 = sadd.s32 %s122, 1
      %p126 = scmp.eq.s32.totalorder %s20, 1
      %p127 = scmp.ne.s32.totalorder %s122, %s124
      %p128 = scmp.eq.s32.totalorder %s20, 0
      %p129 = por %p127, %p128
      %p130 = scmp.ne.s32.totalorder %s122, %s124
      %p131 = scmp.eq.s32.totalorder %s25, 1
      %p132 = por %p130, %p131
      %p133 = scmp.ne.s32.totalorder %s124, %s125
      %p134 = scmp.eq.s32.totalorder %s25, 0
      %p135 = por %p133, %p134
      %p136 = scmp.ne.s32.totalorder %s124, %s125
      %p137 = scmp.eq.s32.totalorder %s26, 1
      %p138 = por %p136, %p137
      %p140 = scmp.ne.s32.totalorder %s125, %s139
      %p141 = scmp.eq.s32.totalorder %s26, 0
      %p142 = por %p140, %p141
      %s144 = sadd.s32 %s143, 1
      %p147 = scmp.eq.s32.totalorder %s20, 1
      %p148 = scmp.ne.s32.totalorder %s143, %s145
      %p149 = scmp.eq.s32.totalorder %s20, 0
      %p150 = por %p148, %p149
      %p151 = scmp.ne.s32.totalorder %s143, %s145
      %p152 = scmp.eq.s32.totalorder %s25, 1
      %p153 = por %p151, %p152
      %p154 = scmp.ne.s32.totalorder %s145, %s146
      %p155 = scmp.eq.s32.totalorder %s25, 0
      %p156 = por %p154, %p155
      %p157 = scmp.ne.s32.totalorder %s145, %s146
      %p158 = scmp.eq.s32.totalorder %s26, 1
      %p159 = por %p157, %p158
      %p161 = scmp.ne.s32.totalorder %s146, %s160
      %p162 = scmp.eq.s32.totalorder %s26, 0
      %p163 = por %p161, %p162
      %s165 = sadd.s32 %s164, 1
      %p168 = scmp.eq.s32.totalorder %s20, 1
      %p169 = scmp.ne.s32.totalorder %s164, %s166
      %p170 = scmp.eq.s32.totalorder %s20, 0
      %p171 = por %p169, %p170
      %p172 = scmp.ne.s32.totalorder %s164, %s166
      %p173 = scmp.eq.s32.totalorder %s25, 1
      %p174 = por %p172, %p173
      %p175 = scmp.ne.s32.totalorder %s166, %s167
      %p176 = scmp.eq.s32.totalorder %s25, 0
      %p177 = por %p175, %p176
      %p178 = scmp.ne.s32.totalorder %s166, %s167
      %p179 = scmp.eq.s32.totalorder %s26, 1
      %p180 = por %p178, %p179
      %p182 = scmp.ne.s32.totalorder %s167, %s181
      %p183 = scmp.eq.s32.totalorder %s26, 0
      %p184 = por %p182, %p183
      %s186 = sadd.s32 %s185, 1
      %p189 = scmp.eq.s32.totalorder %s20, 1
      %p190 = scmp.ne.s32.totalorder %s185, %s187
      %p191 = scmp.eq.s32.totalorder %s20, 0
      %p192 = por %p190, %p191
      %p193 = scmp.ne.s32.totalorder %s185, %s187
      %p194 = scmp.eq.s32.totalorder %s25, 1
      %p195 = por %p193, %p194
      %p196 = scmp.ne.s32.totalorder %s187, %s188
      %p197 = scmp.eq.s32.totalorder %s25, 0
      %p198 = por %p196, %p197
      %p199 = scmp.ne.s32.totalorder %s187, %s188
      %p200 = scmp.eq.s32.totalorder %s26, 1
      %p201 = por %p199, %p200
      %p203 = scmp.ne.s32.totalorder %s188, %s202
      %p204 = scmp.eq.s32.totalorder %s26, 0
      %p205 = por %p203, %p204
      %s207 = sadd.s32 %s206, 1
      %p210 = scmp.eq.s32.totalorder %s20, 1
      %p211 = scmp.ne.s32.totalorder %s206, %s208
      %p212 = scmp.eq.s32.totalorder %s20, 0
      %p213 = por %p211, %p212
      %p214 = scmp.ne.s32.totalorder %s206, %s208
      %p215 = scmp.eq.s32.totalorder %s25, 1
      %p216 = por %p214, %p215
      %p217 = scmp.ne.s32.totalorder %s208, %s209
      %p218 = scmp.eq.s32.totalorder %s25, 0
      %p219 = por %p217, %p218
      %p220 = scmp.ne.s32.totalorder %s208, %s209
      %p221 = scmp.eq.s32.totalorder %s26, 1
      %p222 = por %p220, %p221
      %p224 = scmp.ne.s32.totalorder %s209, %s223
      %p225 = scmp.eq.s32.totalorder %s26, 0
      %p226 = por %p224, %p225
      %s228 = sadd.s32 %s227, 1
      %p231 = scmp.eq.s32.totalorder %s20, 1
      %p232 = scmp.ne.s32.totalorder %s227, %s229
      %p233 = scmp.eq.s32.totalorder %s20, 0
      %p234 = por %p232, %p233
      %p235 = scmp.ne.s32.totalorder %s227, %s229
      %p236 = scmp.eq.s32.totalorder %s25, 1
      %p237 = por %p235, %p236
      %p238 = scmp.ne.s32.totalorder %s229, %s230
      %p239 = scmp.eq.s32.totalorder %s25, 0
      %p240 = por %p238, %p239
      %p241 = scmp.ne.s32.totalorder %s229, %s230
      %p242 = scmp.eq.s32.totalorder %s26, 1
      %p243 = por %p241, %p242
      %p245 = scmp.ne.s32.totalorder %s230, %s244
      %p246 = scmp.eq.s32.totalorder %s26, 0
      %p247 = por %p245, %p246
      %s248 = ssub.s32 %s20, %s27
      %p249 = scmp.eq.s32.totalorder %s248, 0
      %s251 = sadd.s32 %s250, 1
      %s252 = scalar_select %p249, %s250, %s251
      %p255 = pneg %p249
      %p256 = scmp.eq.s32.totalorder %s20, 1
      %p257 = por %p255, %p256
      %p258 = scmp.ne.s32.totalorder %s250, %s253
      %p259 = scmp.eq.s32.totalorder %s20, 0
      %p260 = por %p258, %p259
      %p261 = scmp.ne.s32.totalorder %s250, %s253
      %p262 = scmp.eq.s32.totalorder %s25, 1
      %p263 = por %p261, %p262
      %p264 = scmp.ne.s32.totalorder %s253, %s254
      %p265 = scmp.eq.s32.totalorder %s25, 0
      %p266 = por %p264, %p265
      %p267 = scmp.ne.s32.totalorder %s253, %s254
      %p268 = scmp.eq.s32.totalorder %s26, 1
      %p269 = por %p267, %p268
      %p271 = scmp.ne.s32.totalorder %s254, %s270
      %p272 = scmp.eq.s32.totalorder %s26, 0
      %p273 = por %p271, %p272
      %p274 = scmp.le.s32.totalorder 1, %s20
      %p275 = scmp.lt.s32.totalorder %s20, 3
      %p276 = pnand %p274, %p275
      %p277 = pneg %p276
      // Predicated region
      $region9: #{gin_forward.3} parent=5 // pred_check
        _
      $region10: #{gin_forward.3} parent=5 // pred_check_branch
        %279 = sbr.rel (%p276) target = $region12
      $region11: #{gin_forward.3} parent=5 // pred_region
        %s280 = ssub.s32 %s20, 1
        // Predicated region
        $region13: #{gin_forward.3} parent=11 // pred_check
          %p281 = pneg %p93
        $region14: #{gin_forward.3} parent=11 // pred_check_branch
          %283 = sbr.rel (%p281) target = $region16
        $region15: #{gin_forward.3} parent=11 // pred_region
          _
        $region16: #{gin_forward.3} parent=11 // pred_fallthru
          _
        // Predicated region
        $region17: #{gin_forward.3} parent=11 // pred_check
          %p284 = pneg %p114
        $region18: #{gin_forward.3} parent=11 // pred_check_branch
          %286 = sbr.rel (%p284) target = $region20
        $region19: #{gin_forward.3} parent=11 // pred_region
          _
        $region20: #{gin_forward.3} parent=11 // pred_fallthru
          _
        // Predicated region
        $region21: #{gin_forward.3} parent=11 // pred_check
          %p287 = pneg %p135
        $region22: #{gin_forward.3} parent=11 // pred_check_branch
          %289 = sbr.rel (%p287) target = $region24
        $region23: #{gin_forward.3} parent=11 // pred_region
          _
        $region24: #{gin_forward.3} parent=11 // pred_fallthru
          _
        // Predicated region
        $region25: #{gin_forward.3} parent=11 // pred_check
          %p290 = pneg %p156
        $region26: #{gin_forward.3} parent=11 // pred_check_branch
          %292 = sbr.rel (%p290) target = $region28
        $region27: #{gin_forward.3} parent=11 // pred_region
          _
        $region28: #{gin_forward.3} parent=11 // pred_fallthru
          _
        // Predicated region
        $region29: #{gin_forward.3} parent=11 // pred_check
          %p293 = pneg %p177
        $region30: #{gin_forward.3} parent=11 // pred_check_branch
          %295 = sbr.rel (%p293) target = $region32
        $region31: #{gin_forward.3} parent=11 // pred_region
          _
        $region32: #{gin_forward.3} parent=11 // pred_fallthru
          _
        // Predicated region
        $region33: #{gin_forward.3} parent=11 // pred_check
          %p296 = pneg %p198
        $region34: #{gin_forward.3} parent=11 // pred_check_branch
          %298 = sbr.rel (%p296) target = $region36
        $region35: #{gin_forward.3} parent=11 // pred_region
          _
        $region36: #{gin_forward.3} parent=11 // pred_fallthru
          _
        // Predicated region
        $region37: #{gin_forward.3} parent=11 // pred_check
          %p299 = pneg %p219
        $region38: #{gin_forward.3} parent=11 // pred_check_branch
          %301 = sbr.rel (%p299) target = $region40
        $region39: #{gin_forward.3} parent=11 // pred_region
          _
        $region40: #{gin_forward.3} parent=11 // pred_fallthru
          _
        // Predicated region
        $region41: #{gin_forward.3} parent=11 // pred_check
          %p302 = pneg %p240
        $region42: #{gin_forward.3} parent=11 // pred_check_branch
          %304 = sbr.rel (%p302) target = $region44
        $region43: #{gin_forward.3} parent=11 // pred_region
          _
        $region44: #{gin_forward.3} parent=11 // pred_fallthru
          _
      $region12: #{gin_forward.3} parent=5 // pred_fallthru
        _
      %p305 = scmp.lt.s32.totalorder %s20, 2
      // Predicated region
      $region45: #{gin_forward.3} parent=5 // pred_check
        %p306 = pneg %p305
      $region46: #{gin_forward.3} parent=5 // pred_check_branch
        %308 = sbr.rel (%p306) target = $region48
      $region47: #{gin_forward.3} parent=5 // pred_region
        // Predicated region
        $region49: #{gin_forward.3} parent=47 // pred_check
          %p309 = pneg %p40
        $region50: #{gin_forward.3} parent=47 // pred_check_branch
          %311 = sbr.rel (%p309) target = $region52
        $region51: #{gin_forward.3} parent=47 // pred_region
          %p312 = scmp.lt.s32.totalorder %s20, 1
          %s313 = scalar_select %p312, %s20, 1
          %s314 = smul.addr %s313, 8
          %s315 = scalar_lea.vmem %s0, %s314
        $region52: #{gin_forward.3} parent=47 // pred_fallthru
          _
        // Predicated region
        $region53: #{gin_forward.3} parent=47 // pred_check
          %p316 = pneg %p66
        $region54: #{gin_forward.3} parent=47 // pred_check_branch
          %318 = sbr.rel (%p316) target = $region56
        $region55: #{gin_forward.3} parent=47 // pred_region
          %s319 = sand.u32 %s56, 1
          %s320 = sand.u32 %s56, 1
          %s321 = smul.addr %s320, 16
          %s322 = scalar_lea.vmem [#allocation3], %s321
          %s323 = smul.addr %s20, 8
          %s324 = scalar_lea.vmem %s1, %s323
          // Predicated region
          $region57: #{gin_forward.3} parent=55 // pred_check
            _
          $region58: #{gin_forward.3} parent=55 // pred_check_branch
            %326 = sbr.rel (0) target = $region60
          $region59: #{gin_forward.3} parent=55 // pred_region
            // Predicated region
            $region61: #{gin_forward.3} parent=59 // pred_check
              _
            $region62: #{gin_forward.3} parent=59 // pred_check_branch
              %328 = sbr.rel (0) target = $region64
            $region63: #{gin_forward.3} parent=59 // pred_region
              // Predicated region
              $region76: #{gin_forward.3} parent=63 // pred_check
                _
              $region77: #{gin_forward.3} parent=63 // pred_check_branch
                %345 = sbr.rel (0) target = $region79
              $region78: #{gin_forward.3} parent=63 // pred_region
                loop: start=0, step=1, limit=1
                $region80: #{gin_forward.3} parent=78 // loop_pre_header
                  _
                $region81: #{gin_forward.3} parent=78 // loop_header
                  %s347 = sphi 0, %s351
                  %p348 = scmp.ge.s32.totalorder %s347, 1
                  %s352 = sphi %s324, %s324
                  %s353 = sphi %s322, %s322
                $region82: #{gin_forward.3} parent=78 // loop_header_branch
                  %350 = sbr.rel (%p348) target = $region86
                $region83: #{gin_forward.3} parent=78 // loop_body
                  %v354 = vld [vmem:[%s352] sm:$0xff]
                  %355 = vst [vmem:[%s353] sm:$0xff] %v354
                  %v356 = vld [vmem:[%s352 + $0x10] sm:$0xff]
                  %357 = vst [vmem:[%s353 + $0x8] sm:$0xff] %v356
                $region84: #{gin_forward.3} parent=78 // loop_footer
                  %s351 = sadd.s32 1, %s347
                $region85: #{gin_forward.3} parent=78 // loop_footer_branch
                  %346 = sbr.rel target = $region81
                $region86: #{gin_forward.3} parent=78 // loop_exit
                  _
              $region79: #{gin_forward.3} parent=63 // pred_fallthru
                _
              // Predicated region
              $region87: #{gin_forward.3} parent=63 // pred_check
                _
              $region88: #{gin_forward.3} parent=63 // pred_check_branch
                %359 = sbr.rel target = $region90
              $region89: #{gin_forward.3} parent=63 // pred_region
                _
              $region90: #{gin_forward.3} parent=63 // pred_fallthru
                _
            $region64: #{gin_forward.3} parent=59 // pred_fallthru
              _
            // Predicated region
            $region65: #{gin_forward.3} parent=59 // pred_check
              _
            $region66: #{gin_forward.3} parent=59 // pred_check_branch
              %330 = sbr.rel target = $region68
            $region67: #{gin_forward.3} parent=59 // pred_region
              loop: start=0, step=1, limit=1
              $region69: #{gin_forward.3} parent=67 // loop_pre_header
                _
              $region70: #{gin_forward.3} parent=67 // loop_header
                %s333 = sphi 0, %s337
                %p334 = scmp.ge.s32.totalorder %s333, 1
                %s338 = sphi %s324, %s324
                %s339 = sphi %s322, %s322
              $region71: #{gin_forward.3} parent=67 // loop_header_branch
                %336 = sbr.rel (%p334) target = $region75
              $region72: #{gin_forward.3} parent=67 // loop_body
                %v340 = vld [vmem:[%s338] sm:$0xff]
                %341 = vst [vmem:[%s339] sm:$0xff] %v340
                %v342 = vld [vmem:[%s338 + $0x10] sm:$0xff]
                %343 = vst [vmem:[%s339 + $0x8] sm:$0xff] %v342
              $region73: #{gin_forward.3} parent=67 // loop_footer
                %s337 = sadd.s32 1, %s333
              $region74: #{gin_forward.3} parent=67 // loop_footer_branch
                %332 = sbr.rel target = $region70
              $region75: #{gin_forward.3} parent=67 // loop_exit
                _
            $region68: #{gin_forward.3} parent=59 // pred_fallthru
              _
          $region60: #{gin_forward.3} parent=55 // pred_fallthru
            _
          %360 = vnop
        $region56: #{gin_forward.3} parent=47 // pred_fallthru
          _
      $region48: #{gin_forward.3} parent=5 // pred_fallthru
        _
      %p361 = scmp.le.s32.totalorder 1, %s20
      %p362 = scmp.lt.s32.totalorder %s20, 3
      %p363 = pnand %p361, %p362
      %p364 = pneg %p363
      // Predicated region
      $region91: #{gin_forward.3} parent=5 // pred_check
        _
      $region92: #{gin_forward.3} parent=5 // pred_check_branch
        %366 = sbr.rel (%p363) target = $region94
      $region93: #{gin_forward.3} parent=5 // pred_region
        %s367 = ssub.s32 %s20, 1
        %s368 = sand.u32 %s59, 1
        %s369 = sand.u32 %s59, 1
        %s370 = smul.addr %s369, 16
        %s371 = scalar_lea.vmem [#allocation3], %s370
        // Predicated region
        $region95: #{gin_forward.3} parent=93 // pred_check
          %p372 = pneg %p72
        $region96: #{gin_forward.3} parent=93 // pred_check_branch
          %374 = sbr.rel (%p372) target = $region98
        $region97: #{gin_forward.3} parent=93 // pred_region
          _
        $region98: #{gin_forward.3} parent=93 // pred_fallthru
          _
        %p375 = scmp.lt.s32.totalorder %s25, 1
        %s376 = scalar_select %p375, %s25, 1
        %s377 = smul.addr %s376, 8
        %s378 = scalar_lea.vmem %s0, %s377
        %p379 = pneg %p46
        %p380 = pneg %p43
        %s381 = sand.u32 %s59, 1
        %s382 = sand.u32 %s59, 1
        %s383 = smul.addr %s382, 16
        %s384 = scalar_lea.vmem [#allocation3], %s383
        %p385 = pneg %p72
        %p386 = pneg %p69
        %p387 = pneg %p93
        %p388 = pneg %p90
        %p389 = pneg %p114
        %p390 = pneg %p111
        %p391 = pneg %p135
        %p392 = pneg %p132
        %p393 = pneg %p156
        %p394 = pneg %p153
        %p395 = pneg %p177
        %p396 = pneg %p174
        %p397 = pneg %p198
        %p398 = pneg %p195
        %p399 = pneg %p219
        %p400 = pneg %p216
        %p401 = pneg %p240
        %p402 = pneg %p237
        %p403 = pneg %p266
        %p404 = pneg %p263
        %s405 = sand.u32 %s253, 1
        %s406 = scalar_lea.sflag [#allocation5], %s405
        %s407 = sand.u32 %s253, 1
        %s408 = smul.addr %s407, 8
        %s409 = scalar_lea.vmem [#allocation4], %s408
        %p410 = scmp.lt.s32.totalorder %s25, 1
        %s411 = scalar_select %p410, %s25, 1
        %s412 = smul.addr %s411, 8
        %s413 = scalar_lea.vmem %s0, %s412
        %v414 = vld [vmem:[%s413] sm:$0xff]
        %v415 = vld [vmem:[%s371] sm:$0xff]
        %v416 = vld [vmem:[%s371 + $0x8] sm:$0xff]
        %vm417 = vcmask 261120
        %v418 = vsel %vm417, %v415, 0.0
        %v419 = vsel %vm417, %v416, 0.0
        %v420 = vadd.f32 %v418, %v419
        %s421 = sld [smem:[#allocation2]]
        %s422 = sadd.f32 %s421, 1.0
        %v423 = vstv %s422
        %v424 = vmul.f32 %v423, %v414
        %v425 = vadd.f32 %v424, %v420
        %v426 = vld [vmem:[%s3] sm:$0xff]
        %v427 = vld [vmem:[%s3 + $0x8] sm:$0xff]
        %v428 = vld [vmem:[%s3 + $0x10] sm:$0xff]
        %v429 = vld [vmem:[%s3 + $0x18] sm:$0xff]
        %v430 = vld [vmem:[%s4] sm:$0x1]
        %v432 = vlaneseq
        %v433 = vshrl.u32 %v432, 7
        %v434 = vsub.s32 0, %v433
        %v435 = vrot.slane %v430, %v434
        %v438 = vsel %vm417, %v425, 0
        %440 = vmatprep.subr.mxu0 0.0
        %441 = vmatpush1.msra.mxu0 %v426
        %442 = vmatprep.subr.mxu0 0.0
        %443 = vmatpush1.msra.mxu0 %v427
        %444 = vmatprep.subr.mxu0 0.0
        %445 = vmatpush1.msra.mxu0 %v428
        %446 = vmatprep.subr.mxu0 0.0
        %447 = vmatpush1.msra.mxu0 %v429
        %448 = vmatprep.subr.mxu0 0.0
        %449 = vmatpush1.msra.mxu0 0.0
        %450 = vmatprep.subr.mxu0 0.0
        %451 = vmatpush1.msra.mxu0 0.0
        %452 = vmatprep.subr.mxu0 0.0
        %453 = vmatpush1.msra.mxu0 0.0
        %454 = vmatprep.subr.mxu0 0.0
        %455 = vmatpush1.msra.mxu0 0.0
        %456 = vmatprep.subr.mxu0 0.0
        %457 = vmatpush1.msra.mxu0 0.0
        %458 = vmatprep.subr.mxu0 0.0
        %459 = vmatpush1.msra.mxu0 0.0
        %460 = vmatprep.subr.mxu0 0.0
        %461 = vmatpush1.msra.mxu0 0.0
        %462 = vmatprep.subr.mxu0 0.0
        %463 = vmatpush1.msra.mxu0 0.0
        %464 = vmatprep.subr.mxu0 0.0
        %465 = vmatpush1.msra.mxu0 0.0
        %466 = vmatprep.subr.mxu0 0.0
        %467 = vmatpush1.msra.mxu0 0.0
        %468 = vmatprep.subr.mxu0 0.0
        %469 = vmatpush1.msra.mxu0 0.0
        %470 = vmatprep.subr.mxu0 0.0
        %471 = vmatpush1.msra.mxu0 0.0
        %472 = vmatprep.subr.mxu0 0.0
        %473 = vmatpush1.msra.mxu0 0.0
        %474 = vmatprep.subr.mxu0 0.0
        %475 = vmatpush1.msra.mxu0 0.0
        %476 = vmatprep.subr.mxu0 0.0
        %477 = vmatpush1.msra.mxu0 0.0
        %478 = vmatprep.subr.mxu0 0.0
        %479 = vmatpush1.msra.mxu0 0.0
        %480 = vmatprep.subr.mxu0 0.0
        %481 = vmatpush1.msra.mxu0 0.0
        %482 = vmatprep.subr.mxu0 0.0
        %483 = vmatpush1.msra.mxu0 0.0
        %484 = vmatprep.subr.mxu0 0.0
        %485 = vmatpush1.msra.mxu0 0.0
        %486 = vmatprep.subr.mxu0 0.0
        %487 = vmatpush1.msra.mxu0 0.0
        %488 = vmatprep.subr.mxu0 0.0
        %489 = vmatpush1.msra.mxu0 0.0
        %490 = vmatprep.subr.mxu0 0.0
        %491 = vmatpush1.msra.mxu0 0.0
        %492 = vmatprep.subr.mxu0 0.0
        %493 = vmatpush1.msra.mxu0 0.0
        %494 = vmatprep.subr.mxu0 0.0
        %495 = vmatpush1.msra.mxu0 0.0
        %496 = vmatprep.subr.mxu0 0.0
        %497 = vmatpush1.msra.mxu0 0.0
        %498 = vmatprep.subr.mxu0 0.0
        %499 = vmatpush1.msra.mxu0 0.0
        %500 = vmatprep.subr.mxu0 0.0
        %501 = vmatpush1.msra.mxu0 0.0
        %502 = vmatprep.subr.mxu0 0.0
        %503 = vmatpush1.msra.mxu0 0.0
        %504 = vmatprep.mubr.f32.mxu0 0.0
        %505 = vmatmul.mubr.f32.gmra.mrb[0].mxu0 %v438
        %v506 = vpop.f32.mrb[0].mxu0
        %v507 = vadd.f32 %v435, %v506
        %v508 = vpop.f32.mrb[0].mxu0
        %509 = vdwg.mxu0
        %v510 = vld [vmem:[%s5] sm:$0x1]
        %v511 = vld [vmem:[%s6] sm:$0x1]
        %v512 = vsel %vm417, %v507, 0.0
        %513 = vadd.xlane.f32.xlu0 %v512
        %v514 = vpop.xlane.xlu0 %513
        %v515 = vrcp.pop 32.0
        %v516 = vmul.f32 %v514, %v515
        %v517 = vsub.f32 %v507, %v516
        %v518 = vmul.f32 %v517, %v517
        %v519 = vsel %vm417, %v518, 0.0
        %520 = vadd.xlane.f32.xlu0 %v519
        %v521 = vpop.xlane.xlu0 %520
        %v522 = vmul.f32 %v521, %v515
        %v523 = vadd.f32 %v522, 1e-05
        %v524 = vrsqrt.pop %v523
        %v525 = vmul.f32 %v517, %v524
        %v527 = vlaneseq
        %v528 = vshrl.u32 %v527, 7
        %v529 = vsub.s32 0, %v528
        %v530 = vrot.slane %v510, %v529
        %v532 = vmul.f32 %v525, %v530
        %v534 = vlaneseq
        %v535 = vshrl.u32 %v534, 7
        %v536 = vsub.s32 0, %v535
        %v537 = vrot.slane %v511, %v536
        %v539 = vadd.f32 %v532, %v537
        %v540 = vmax.f32 %v539, 0.0
        %v541 = vld [vmem:[%s7] sm:$0xff]
        %v542 = vld [vmem:[%s7 + $0x8] sm:$0xff]
        %v543 = vld [vmem:[%s7 + $0x10] sm:$0xff]
        %v544 = vld [vmem:[%s7 + $0x18] sm:$0xff]
        %v545 = vld [vmem:[%s8] sm:$0xff]
        %v546 = vld [vmem:[%s8 + $0x8] sm:$0xff]
        %v547 = vld [vmem:[%s8 + $0x10] sm:$0xff]
        %v548 = vld [vmem:[%s8 + $0x18] sm:$0xff]
        %v550 = vsel %vm417, %v414, 0
        %552 = vmatprep.subr.mxu0 0.0
        %553 = vmatpush1.msra.mxu0 %v545
        %554 = vmatprep.subr.mxu0 0.0
        %555 = vmatpush1.msra.mxu0 %v546
        %556 = vmatprep.subr.mxu0 0.0
        %557 = vmatpush1.msra.mxu0 %v547
        %558 = vmatprep.subr.mxu0 0.0
        %559 = vmatpush1.msra.mxu0 %v548
        %560 = vmatprep.subr.mxu0 0.0
        %561 = vmatpush1.msra.mxu0 0.0
        %562 = vmatprep.subr.mxu0 0.0
        %563 = vmatpush1.msra.mxu0 0.0
        %564 = vmatprep.subr.mxu0 0.0
        %565 = vmatpush1.msra.mxu0 0.0
        %566 = vmatprep.subr.mxu0 0.0
        %567 = vmatpush1.msra.mxu0 0.0
        %568 = vmatprep.subr.mxu0 0.0
        %569 = vmatpush1.msra.mxu0 0.0
        %570 = vmatprep.subr.mxu0 0.0
        %571 = vmatpush1.msra.mxu0 0.0
        %572 = vmatprep.subr.mxu0 0.0
        %573 = vmatpush1.msra.mxu0 0.0
        %574 = vmatprep.subr.mxu0 0.0
        %575 = vmatpush1.msra.mxu0 0.0
        %576 = vmatprep.subr.mxu0 0.0
        %577 = vmatpush1.msra.mxu0 0.0
        %578 = vmatprep.subr.mxu0 0.0
        %579 = vmatpush1.msra.mxu0 0.0
        %580 = vmatprep.subr.mxu0 0.0
        %581 = vmatpush1.msra.mxu0 0.0
        %582 = vmatprep.subr.mxu0 0.0
        %583 = vmatpush1.msra.mxu0 0.0
        %584 = vmatprep.subr.mxu0 0.0
        %585 = vmatpush1.msra.mxu0 0.0
        %586 = vmatprep.subr.mxu0 0.0
        %587 = vmatpush1.msra.mxu0 0.0
        %588 = vmatprep.subr.mxu0 0.0
        %589 = vmatpush1.msra.mxu0 0.0
        %590 = vmatprep.subr.mxu0 0.0
        %591 = vmatpush1.msra.mxu0 0.0
        %592 = vmatprep.subr.mxu0 0.0
        %593 = vmatpush1.msra.mxu0 0.0
        %594 = vmatprep.subr.mxu0 0.0
        %595 = vmatpush1.msra.mxu0 0.0
        %596 = vmatprep.subr.mxu0 0.0
        %597 = vmatpush1.msra.mxu0 0.0
        %598 = vmatprep.subr.mxu0 0.0
        %599 = vmatpush1.msra.mxu0 0.0
        %600 = vmatprep.subr.mxu0 0.0
        %601 = vmatpush1.msra.mxu0 0.0
        %602 = vmatprep.subr.mxu0 0.0
        %603 = vmatpush1.msra.mxu0 0.0
        %604 = vmatprep.subr.mxu0 0.0
        %605 = vmatpush1.msra.mxu0 0.0
        %606 = vmatprep.subr.mxu0 0.0
        %607 = vmatpush1.msra.mxu0 0.0
        %608 = vmatprep.subr.mxu0 0.0
        %609 = vmatpush1.msra.mxu0 0.0
        %610 = vmatprep.subr.mxu0 0.0
        %611 = vmatpush1.msra.mxu0 0.0
        %612 = vmatprep.subr.mxu0 0.0
        %613 = vmatpush1.msra.mxu0 0.0
        %614 = vmatprep.subr.mxu0 0.0
        %615 = vmatpush1.msra.mxu0 0.0
        %616 = vmatprep.mubr.f32.mxu0 0.0
        %617 = vmatmul.mubr.f32.gmra.mrb[0].mxu0 %v550
        %v618 = vpop.f32.mrb[0].mxu0
        %v619 = vadd.f32 0.0, %v618
        %v620 = vpop.f32.mrb[0].mxu0
        %621 = vdwg.mxu0
        %v623 = vsel %vm417, %v540, 0
        %625 = vmatprep.subr.mxu0 0.0
        %626 = vmatpush1.msra.mxu0 %v541
        %627 = vmatprep.subr.mxu0 0.0
        %628 = vmatpush1.msra.mxu0 %v542
        %629 = vmatprep.subr.mxu0 0.0
        %630 = vmatpush1.msra.mxu0 %v543
        %631 = vmatprep.subr.mxu0 0.0
        %632 = vmatpush1.msra.mxu0 %v544
        %633 = vmatprep.subr.mxu0 0.0
        %634 = vmatpush1.msra.mxu0 0.0
        %635 = vmatprep.subr.mxu0 0.0
        %636 = vmatpush1.msra.mxu0 0.0
        %637 = vmatprep.subr.mxu0 0.0
        %638 = vmatpush1.msra.mxu0 0.0
        %639 = vmatprep.subr.mxu0 0.0
        %640 = vmatpush1.msra.mxu0 0.0
        %641 = vmatprep.subr.mxu0 0.0
        %642 = vmatpush1.msra.mxu0 0.0
        %643 = vmatprep.subr.mxu0 0.0
        %644 = vmatpush1.msra.mxu0 0.0
        %645 = vmatprep.subr.mxu0 0.0
        %646 = vmatpush1.msra.mxu0 0.0
        %647 = vmatprep.subr.mxu0 0.0
        %648 = vmatpush1.msra.mxu0 0.0
        %649 = vmatprep.subr.mxu0 0.0
        %650 = vmatpush1.msra.mxu0 0.0
        %651 = vmatprep.subr.mxu0 0.0
        %652 = vmatpush1.msra.mxu0 0.0
        %653 = vmatprep.subr.mxu0 0.0
        %654 = vmatpush1.msra.mxu0 0.0
        %655 = vmatprep.subr.mxu0 0.0
        %656 = vmatpush1.msra.mxu0 0.0
        %657 = vmatprep.subr.mxu0 0.0
        %658 = vmatpush1.msra.mxu0 0.0
        %659 = vmatprep.subr.mxu0 0.0
        %660 = vmatpush1.msra.mxu0 0.0
        %661 = vmatprep.subr.mxu0 0.0
        %662 = vmatpush1.msra.mxu0 0.0
        %663 = vmatprep.subr.mxu0 0.0
        %664 = vmatpush1.msra.mxu0 0.0
        %665 = vmatprep.subr.mxu0 0.0
        %666 = vmatpush1.msra.mxu0 0.0
        %667 = vmatprep.subr.mxu0 0.0
        %668 = vmatpush1.msra.mxu0 0.0
        %669 = vmatprep.subr.mxu0 0.0
        %670 = vmatpush1.msra.mxu0 0.0
        %671 = vmatprep.subr.mxu0 0.0
        %672 = vmatpush1.msra.mxu0 0.0
        %673 = vmatprep.subr.mxu0 0.0
        %674 = vmatpush1.msra.mxu0 0.0
        %675 = vmatprep.subr.mxu0 0.0
        %676 = vmatpush1.msra.mxu0 0.0
        %677 = vmatprep.subr.mxu0 0.0
        %678 = vmatpush1.msra.mxu0 0.0
        %679 = vmatprep.subr.mxu0 0.0
        %680 = vmatpush1.msra.mxu0 0.0
        %681 = vmatprep.subr.mxu0 0.0
        %682 = vmatpush1.msra.mxu0 0.0
        %683 = vmatprep.subr.mxu0 0.0
        %684 = vmatpush1.msra.mxu0 0.0
        %685 = vmatprep.subr.mxu0 0.0
        %686 = vmatpush1.msra.mxu0 0.0
        %687 = vmatprep.subr.mxu0 0.0
        %688 = vmatpush1.msra.mxu0 0.0
        %689 = vmatprep.mubr.f32.mxu0 0.0
        %690 = vmatmul.mubr.f32.gmra.mrb[0].mxu0 %v623
        %v691 = vpop.f32.mrb[0].mxu0
        %v692 = vadd.f32 %v619, %v691
        %v693 = vpop.f32.mrb[0].mxu0
        %694 = vdwg.mxu0
        %v695 = vld [vmem:[%s9] sm:$0x1]
        %v697 = vlaneseq
        %v698 = vshrl.u32 %v697, 7
        %v699 = vsub.s32 0, %v698
        %v700 = vrot.slane %v695, %v699
        %v702 = vadd.f32 %v692, %v700
        %703 = vst [vmem:[%s409] sm:$0xff] %v702
        %s704 = sand.u32 %s253, 1
        %s705 = scalar_lea.sflag [#allocation5], %s704
        %s706 = sand.u32 %s253, 1
        %s707 = smul.addr %s706, 8
        %s708 = scalar_lea.vmem [#allocation4], %s707
        // Predicated region
        $region99: #{gin_forward.3} parent=93 // pred_check
          %p709 = pneg %p263
        $region100: #{gin_forward.3} parent=93 // pred_check_branch
          %711 = sbr.rel (%p709) target = $region102
        $region101: #{gin_forward.3} parent=93 // pred_region
          %s713 = ssub.s32 128, 128
          %714 = vsyncadd %s705, %s713
          %s715 = smul.addr %s25, 128
          %s716 = scalar_lea.hbm %s10, %s715
          %s718 = sshll.u32 %s708, 4
          %s719 = int_to_ptr.vmem [resolvable:$true] %s718
          %721 = dma.vmem_to_hbm [thread:$0]  %s719, 128, %s716, %s705
        $region102: #{gin_forward.3} parent=93 // pred_fallthru
          _
      $region94: #{gin_forward.3} parent=5 // pred_fallthru
        _
      %p722 = scmp.le.s32.totalorder 2, %s20
      // Predicated region
      $region103: #{gin_forward.3} parent=5 // pred_check
        %p723 = pneg %p722
      $region104: #{gin_forward.3} parent=5 // pred_check_branch
        %725 = sbr.rel (%p723) target = $region106
      $region105: #{gin_forward.3} parent=5 // pred_region
        %s726 = ssub.s32 %s20, 2
        // Predicated region
        $region107: #{gin_forward.3} parent=105 // pred_check
          %p727 = pneg %p269
        $region108: #{gin_forward.3} parent=105 // pred_check_branch
          %729 = sbr.rel (%p727) target = $region110
        $region109: #{gin_forward.3} parent=105 // pred_region
          %s730 = sand.u32 %s254, 1
          %s731 = scalar_lea.sflag [#allocation5], %s730
          %s732 = sand.u32 %s254, 1
          %s733 = smul.addr %s732, 8
          %s734 = scalar_lea.vmem [#allocation4], %s733
          %735 = dma.done %s731, 128
        $region110: #{gin_forward.3} parent=105 // pred_fallthru
          _
      $region106: #{gin_forward.3} parent=5 // pred_fallthru
        _
    $region6: #{gin_forward.3} parent=1 // loop_footer
      %s24 = sadd.s32 1, %s20
    $region7: #{gin_forward.3} parent=1 // loop_footer_branch
      %19 = sbr.rel target = $region3
    $region8: #{gin_forward.3} parent=1 // loop_exit
      _
    %736 = vsyncpa [#allocation5], 1
    %s737 = scalar_lea.sflag [#allocation5], 1
    %738 = vsyncpa %s737, 1

</llo_original>
